<compile_context>
chip_gen: v7x
topology: tpu7x:2x2x1
jax: 0.10.0
libtpu: 0.0.40
codegen_flags: <defaults>
</compile_context>

<pallas_src>
import functools

import jax
import jax.numpy as jnp
from jax import lax
from jax.experimental import pallas as pl
from jax.experimental.pallas import tpu as pltpu


def bert_self_output_kernel(x_ref, w_ref, b_ref, res_ref, gamma_ref, beta_ref,
                            o_ref, *, eps):
    # x_ref:      (tm, H) hidden_states tile, original dtype (cast to bf16 in-kernel)
    # w_ref:      (H,  H) bf16 dense weight, (in, out) layout, resident + single-buffered
    # b_ref:      (1,  H) f32 dense bias
    # res_ref:    (tm, H) residual tile (input_tensor)
    # gamma/beta: (1,  H) f32 LayerNorm affine params
    # o_ref:      (tm, H)
    x = x_ref[...].astype(jnp.bfloat16)                     # in-kernel cast, hidden under DMA
    h = jnp.dot(x, w_ref[...], preferred_element_type=jnp.float32)
    h = h + b_ref[...].astype(jnp.float32)
    # TODO(synk): dropout is a no-op here (eval-mode / p=0 semantics).
    h = h + res_ref[...].astype(jnp.float32)

    # One-pass LayerNorm statistics: var = E[h^2] - E[h]^2 (single sweep over h).
    mean = jnp.mean(h, axis=-1, keepdims=True)
    mean_sq = jnp.mean(h * h, axis=-1, keepdims=True)
    var = mean_sq - mean * mean
    inv = lax.rsqrt(var + eps)
    out = (h - mean) * inv * gamma_ref[...].astype(jnp.float32) \
          + beta_ref[...].astype(jnp.float32)
    o_ref[...] = out.astype(o_ref.dtype)


def prepare_dense_weight(weight):
    """PyTorch Linear weight (out, in) -> (in, out) bf16. Do this ONCE at param-prep time."""
    return jnp.transpose(weight).astype(jnp.bfloat16)


def bert_self_output(hidden_states, input_tensor, weight_t_bf16, bias, gamma, beta,
                     *, eps=1e-12, tm=512):
    """y = LayerNorm(hidden_states @ W^T + bias + input_tensor).

    hidden_states, input_tensor: [B, S, H].
    weight_t_bf16: [H, H] already transposed to (in, out) and cast to bf16
                   (see prepare_dense_weight).
    """
    B, S, H = hidden_states.shape
    M = B * S
    out_dtype = input_tensor.dtype

    # Free reshapes / broadcasts only — no wrapper-side casts or pads of the big
    # activation / residual streams.
    x2 = hidden_states.reshape(M, H)
    r2 = input_tensor.reshape(M, H)
    b2 = bias.reshape(1, H).astype(jnp.float32)
    g2 = gamma.reshape(1, H).astype(jnp.float32)
    be2 = beta.reshape(1, H).astype(jnp.float32)

    # Row tile: multiple of 8 (sublane), default 512 (multiple of 128 for v5e MXU,
    # 256 for v6e/v7x). Clamp for tiny M.
    tm_eff = min(tm, ((M + 7) // 8) * 8)
    num_tiles = pl.cdiv(M, tm_eff)

    kernel = functools.partial(bert_self_output_kernel, eps=eps)

    x_b = jnp.dtype(hidden_states.dtype).itemsize
    r_b = jnp.dtype(input_tensor.dtype).itemsize
    o_b = jnp.dtype(out_dtype).itemsize
    # VMEM budget: single-buffered bf16 weight + double-buffered x/res/out tiles
    # + ~4 f32 tile-sized compiler temporaries (h, products, normed) + params + headroom.
    vmem_bytes = (H * H * 2                                  # resident bf16 weight (1 buffer)
                  + 2 * tm_eff * H * x_b                     # x tile, 2 buffers
                  + 2 * tm_eff * H * r_b                     # residual tile, 2 buffers
                  + 2 * tm_eff * H * o_b                     # output tile, 2 buffers
                  + 4 * tm_eff * H * 4                       # f32 intermediates
                  + 3 * H * 4                                # bias/gamma/beta
                  + (4 << 20))                               # headroom
    vmem_bytes = int(min(max(vmem_bytes, 32 << 20), 64 << 20))  # portable incl. v7x

    out = pl.pallas_call(
        kernel,
        out_shape=jax.ShapeDtypeStruct((M, H), out_dtype),
        grid_spec=pltpu.PrefetchScalarGridSpec(
            num_scalar_prefetch=0,
            grid=(num_tiles,),
            in_specs=[
                pl.BlockSpec((tm_eff, H), lambda i: (i, 0)),                 # x tile
                pl.BlockSpec((H, H), lambda i: (0, 0),
                             pipeline_mode=pl.Buffered(1)),                  # weight (resident)
                pl.BlockSpec((1, H), lambda i: (0, 0),
                             pipeline_mode=pl.Buffered(1)),                  # bias
                pl.BlockSpec((tm_eff, H), lambda i: (i, 0)),                 # residual tile
                pl.BlockSpec((1, H), lambda i: (0, 0),
                             pipeline_mode=pl.Buffered(1)),                  # gamma
                pl.BlockSpec((1, H), lambda i: (0, 0),
                             pipeline_mode=pl.Buffered(1)),                  # beta
            ],
            out_specs=pl.BlockSpec((tm_eff, H), lambda i: (i, 0)),
        ),
        compiler_params=pltpu.CompilerParams(
            dimension_semantics=("parallel",),
            vmem_limit_bytes=vmem_bytes),
    )(x2, weight_t_bf16, b2, r2, g2, be2)
    return out.reshape(B, S, H)


if __name__ == "__main__":
    # Config consistent with BertSelfOutput: hidden_size=256 (lane-dense),
    # batch=2, seq=320 -> M=640: exercises one full 512-row tile + one ragged tile.
    B, S = 2, 320
    hidden_size = 256
    initializer_range = 0.02
    layer_norm_eps = 1e-12

    key = jax.random.PRNGKey(0)
    k_x, k_r, k_w = jax.random.split(key, 3)

    # init_weights(): Linear.weight ~ N(0, initializer_range), Linear.bias = 0,
    # LayerNorm.weight = 1, LayerNorm.bias = 0. PyTorch Linear weight is (out, in).
    w = jax.random.normal(k_w, (hidden_size, hidden_size), jnp.float32) * initializer_range
    bias = jnp.zeros((hidden_size,), jnp.float32)
    gamma = jnp.ones((hidden_size,), jnp.float32)
    beta = jnp.zeros((hidden_size,), jnp.float32)

    hidden_states = jax.random.normal(k_x, (B, S, hidden_size), jnp.float32)
    input_tensor = jax.random.normal(k_r, (B, S, hidden_size), jnp.float32)

    # Parameter preparation done once (not per call).
    w_t = prepare_dense_weight(w)

    out = bert_self_output(hidden_states, input_tensor, w_t, bias, gamma, beta,
                           eps=layer_norm_eps, tm=512)
    out = jax.block_until_ready(out)

    # Reference in plain JAX with the same bf16-operand / f32-accumulate matmul.
    # (bf16 x/W is an intentional precision choice vs. the f32 PyTorch module.)
    xb = hidden_states.reshape(-1, hidden_size).astype(jnp.bfloat16)
    h_ref = jnp.dot(xb, w_t, preferred_element_type=jnp.float32)
    h_ref = h_ref.reshape(B, S, hidden_size) + bias + input_tensor
    mu = jnp.mean(h_ref, axis=-1, keepdims=True)
    var = jnp.mean((h_ref - mu) ** 2, axis=-1, keepdims=True)
    ref = (h_ref - mu) / jnp.sqrt(var + layer_norm_eps) * gamma + beta

    assert out.shape == (B, S, hidden_size)
    assert jnp.allclose(out, ref, atol=2e-3, rtol=2e-3)

    print("KERNEL_OK")
</pallas_src>

<mosaic_0001>
module attributes {stable_mosaic.version = 11 : i64} {
  func.func @bert_self_output_kernel(%arg0: i32, %arg1: memref<512x256xf32, #tpu.memory_space<vmem>>, %arg2: memref<256x256xbf16, #tpu.memory_space<vmem>>, %arg3: memref<1x256xf32, #tpu.memory_space<vmem>>, %arg4: memref<512x256xf32, #tpu.memory_space<vmem>>, %arg5: memref<1x256xf32, #tpu.memory_space<vmem>>, %arg6: memref<1x256xf32, #tpu.memory_space<vmem>>, %arg7: memref<512x256xf32, #tpu.memory_space<vmem>>) attributes {dimension_semantics = [#tpu.dimension_semantics<parallel>], iteration_bounds = array<i64: 2>, scalar_prefetch = 0 : i64, scratch_operands = 0 : i64, tpu.core_type = #tpu.core_type<tc>, window_params = [{transform_indices = @transform_0, window_bounds = array<i64: 512, 256>}, {pipeline_mode = #tpu.pipeline_mode<synchronous>, transform_indices = @transform_1, window_bounds = array<i64: 256, 256>}, {pipeline_mode = #tpu.pipeline_mode<synchronous>, transform_indices = @transform_2, window_bounds = array<i64: 1, 256>}, {transform_indices = @transform_3, window_bounds = array<i64: 512, 256>}, {pipeline_mode = #tpu.pipeline_mode<synchronous>, transform_indices = @transform_4, window_bounds = array<i64: 1, 256>}, {pipeline_mode = #tpu.pipeline_mode<synchronous>, transform_indices = @transform_5, window_bounds = array<i64: 1, 256>}, {transform_indices = @transform_6, window_bounds = array<i64: 512, 256>}]} {
    %c0 = arith.constant 0 : index
    %c0_0 = arith.constant 0 : index
    %0 = vector.load %arg1[%c0, %c0_0] : memref<512x256xf32, #tpu.memory_space<vmem>>, vector<512x256xf32>
    %1 = arith.truncf %0 : vector<512x256xf32> to vector<512x256xbf16>
    %c0_1 = arith.constant 0 : index
    %c0_2 = arith.constant 0 : index
    %2 = vector.load %arg2[%c0_1, %c0_2] : memref<256x256xbf16, #tpu.memory_space<vmem>>, vector<256x256xbf16>
    %cst = arith.constant dense<0.000000e+00> : vector<512x256xf32>
    %3 = tpu.matmul %1, %2, %cst {dimension_numbers = #tpu.dot_dimension_numbers<[1], [0], [0], [1], [0, 0, 1, 1], [], []>} : vector<512x256xbf16>, vector<256x256xbf16>, vector<512x256xf32> -> vector<512x256xf32>
    %c0_3 = arith.constant 0 : index
    %c0_4 = arith.constant 0 : index
    %4 = vector.load %arg3[%c0_3, %c0_4] : memref<1x256xf32, #tpu.memory_space<vmem>>, vector<1x256xf32>
    %5 = vector.broadcast %4 : vector<1x256xf32> to vector<512x256xf32>
    %6 = arith.addf %3, %5 : vector<512x256xf32>
    %c0_5 = arith.constant 0 : index
    %c0_6 = arith.constant 0 : index
    %7 = vector.load %arg4[%c0_5, %c0_6] : memref<512x256xf32, #tpu.memory_space<vmem>>, vector<512x256xf32>
    %8 = arith.addf %6, %7 : vector<512x256xf32>
    %cst_7 = arith.constant dense<0.000000e+00> : vector<512xf32>
    %9 = vector.multi_reduction <add>, %8, %cst_7 [1] : vector<512x256xf32> to vector<512xf32>
    %10 = vector.shape_cast %9 : vector<512xf32> to vector<512x1xf32>
    %cst_8 = arith.constant 2.560000e+02 : f32
    %11 = vector.broadcast %cst_8 : f32 to vector<512x1xf32>
    %12 = arith.divf %10, %11 : vector<512x1xf32>
    %13 = arith.mulf %8, %8 : vector<512x256xf32>
    %cst_9 = arith.constant dense<0.000000e+00> : vector<512xf32>
    %14 = vector.multi_reduction <add>, %13, %cst_9 [1] : vector<512x256xf32> to vector<512xf32>
    %15 = vector.shape_cast %14 : vector<512xf32> to vector<512x1xf32>
    %cst_10 = arith.constant 2.560000e+02 : f32
    %16 = vector.broadcast %cst_10 : f32 to vector<512x1xf32>
    %17 = arith.divf %15, %16 : vector<512x1xf32>
    %18 = arith.mulf %12, %12 : vector<512x1xf32>
    %19 = arith.subf %17, %18 : vector<512x1xf32>
    %cst_11 = arith.constant 9.99999996E-13 : f32
    %20 = vector.broadcast %cst_11 : f32 to vector<512x1xf32>
    %21 = arith.addf %19, %20 : vector<512x1xf32>
    %22 = math.rsqrt %21 : vector<512x1xf32>
    %23 = vector.broadcast %12 : vector<512x1xf32> to vector<512x256xf32>
    %24 = arith.subf %8, %23 : vector<512x256xf32>
    %25 = vector.broadcast %22 : vector<512x1xf32> to vector<512x256xf32>
    %26 = arith.mulf %24, %25 : vector<512x256xf32>
    %c0_12 = arith.constant 0 : index
    %c0_13 = arith.constant 0 : index
    %27 = vector.load %arg5[%c0_12, %c0_13] : memref<1x256xf32, #tpu.memory_space<vmem>>, vector<1x256xf32>
    %28 = vector.broadcast %27 : vector<1x256xf32> to vector<512x256xf32>
    %29 = arith.mulf %26, %28 : vector<512x256xf32>
    %c0_14 = arith.constant 0 : index
    %c0_15 = arith.constant 0 : index
    %30 = vector.load %arg6[%c0_14, %c0_15] : memref<1x256xf32, #tpu.memory_space<vmem>>, vector<1x256xf32>
    %31 = vector.broadcast %30 : vector<1x256xf32> to vector<512x256xf32>
    %32 = arith.addf %29, %31 : vector<512x256xf32>
    %c0_16 = arith.constant 0 : index
    %c0_17 = arith.constant 0 : index
    %33 = vector.load %arg7[%c0_16, %c0_17] : memref<512x256xf32, #tpu.memory_space<vmem>>, vector<512x256xf32>
    tpu.vector_store %arg7[%c0_16, %c0_17], %32 {strides = array<i32>} : memref<512x256xf32, #tpu.memory_space<vmem>>, vector<512x256xf32>,
    return
  }
  func.func @transform_0(%arg0: i32) -> (i32, i32) {
    %c0_i32 = arith.constant 0 : i32
    %c0_i32_0 = arith.constant 0 : i32
    return %arg0, %c0_i32 : i32, i32
  }
  func.func @transform_1(%arg0: i32) -> (i32, i32) {
    %c0_i32 = arith.constant 0 : i32
    %c0_i32_0 = arith.constant 0 : i32
    %c0_i32_1 = arith.constant 0 : i32
    return %c0_i32, %c0_i32_0 : i32, i32
  }
  func.func @transform_2(%arg0: i32) -> (i32, i32) {
    %c0_i32 = arith.constant 0 : i32
    %c0_i32_0 = arith.constant 0 : i32
    %c0_i32_1 = arith.constant 0 : i32
    return %c0_i32, %c0_i32_0 : i32, i32
  }
  func.func @transform_3(%arg0: i32) -> (i32, i32) {
    %c0_i32 = arith.constant 0 : i32
    %c0_i32_0 = arith.constant 0 : i32
    return %arg0, %c0_i32 : i32, i32
  }
  func.func @transform_4(%arg0: i32) -> (i32, i32) {
    %c0_i32 = arith.constant 0 : i32
    %c0_i32_0 = arith.constant 0 : i32
    %c0_i32_1 = arith.constant 0 : i32
    return %c0_i32, %c0_i32_0 : i32, i32
  }
  func.func @transform_5(%arg0: i32) -> (i32, i32) {
    %c0_i32 = arith.constant 0 : i32
    %c0_i32_0 = arith.constant 0 : i32
    %c0_i32_1 = arith.constant 0 : i32
    return %c0_i32, %c0_i32_0 : i32, i32
  }
  func.func @transform_6(%arg0: i32) -> (i32, i32) {
    %c0_i32 = arith.constant 0 : i32
    %c0_i32_0 = arith.constant 0 : i32
    return %arg0, %c0_i32 : i32, i32
  }
}

</mosaic_0001>

<llo_original>
// kernel: tpu_custom_call.1
$region0: #{tpu_custom_call.1}
  #allocation0 [shape = 'u32[]', space=smem, size = 0x4, offset = 0x4, fixed_abs, tag = 'smem constant byte address 0x4 - core index']
  #allocation1 [shape = 'u32[144,128]{1,0:T(1,128)}', space=vmem, size = 0x12000, scoped, tag = 'internal scratch']
  %s0 = inlined_call_operand.hbm [shape: f32[640,256], index: 0, kind: input, shape index: {}]
  %s1 = inlined_call_operand.hbm [shape: bf16[256,256], index: 1, kind: input, shape index: {}]
  %s2 = inlined_call_operand.vmem [shape: f32[1,256], index: 2, kind: input, shape index: {}]
  %s3 = inlined_call_operand.hbm [shape: f32[640,256], index: 3, kind: input, shape index: {}]
  %s4 = inlined_call_operand.vmem [shape: f32[1,256], index: 4, kind: input, shape index: {}]
  %s5 = inlined_call_operand.vmem [shape: f32[1,256], index: 5, kind: input, shape index: {}]
  %s6 = inlined_call_operand.hbm [shape: f32[640,256], index: 6, kind: output, shape index: {}]
  %s7 = sld [smem:[#allocation0]]
  $region69: #{tpu_custom_call.1} parent=0
    _
  %s9 = ssub.s32 1, %s7
  %s10 = scalar_select 0, %s9, %s7
  $region1: #{tpu_custom_call.1} parent=0
    #allocation2 [shape = 'u8[1048576]{0}', space=vmem, size = 0x100000, scoped, tag = 'input window, operand 0']
    #allocation3 [shape = 's32[2]{0}', space=sflag, size = 0x8, scoped, tag = 'scoped memory for tpu_custom_call.1']
    #allocation4 [shape = 's32[2]{0}', space=sflag, size = 0x8, scoped, tag = 'scoped memory for tpu_custom_call.1']
    #allocation5 [shape = 'u8[131072]{0}', space=vmem, size = 0x20000, scoped, tag = 'input window, operand 1, single buffered']
    #allocation6 [shape = 's32[1]{0}', space=sflag, size = 0x4, scoped, tag = 'scoped memory for tpu_custom_call.1']
    #allocation7 [shape = 'u8[1048576]{0}', space=vmem, size = 0x100000, scoped, tag = 'input window, operand 3']
    #allocation8 [shape = 'u8[1048576]{0}', space=vmem, size = 0x100000, scoped, tag = 'output window, operand 0']
    %11 = vsyncpa [#allocation3], 0
    %s12 = scalar_lea.sflag [#allocation3], 1
    %13 = vsyncpa %s12, 0
    %14 = vsyncpa [#allocation6], 0
    %15 = vsyncpa [#allocation4], 0
    %s16 = scalar_lea.sflag [#allocation4], 1
    %17 = vsyncpa %s16, 0
    loop: start=0, step=1, limit=4
    $region2: #{tpu_custom_call.1} parent=1 // loop_pre_header
      _
    $region3: #{tpu_custom_call.1} parent=1 // loop_header
      %s19 = sphi 0, %s23
      %p20 = scmp.ge.s32.totalorder %s19, 4
      %s29 = sphi 0, %s31
      %s32 = sphi 0, %s29
      %s33 = sphi 0, %s32
      %s49 = sphi 0, %s33
      %s53 = sphi 0, %s53
      %s55 = sphi 0, %s53
      %s56 = sphi 0, %s55
      %s70 = sphi 0, %s56
      %s74 = sphi 0, %s74
      %s76 = sphi 0, %s74
      %s77 = sphi 0, %s76
      %s91 = sphi 0, %s77
      %s97 = sphi 0, %s99
      %s100 = sphi 0, %s97
      %s101 = sphi 0, %s100
      %s117 = sphi 0, %s101
      %s121 = sphi 0, %s121
      %s123 = sphi 0, %s121
      %s124 = sphi 0, %s123
      %s138 = sphi 0, %s124
      %s142 = sphi 0, %s142
      %s144 = sphi 0, %s142
      %s145 = sphi 0, %s144
      %s159 = sphi 0, %s145
      %s165 = sphi 0, %s167
      %s168 = sphi 0, %s165
      %s169 = sphi 0, %s168
      %s185 = sphi 0, %s169
    $region4: #{tpu_custom_call.1} parent=1 // loop_header_branch
      %22 = sbr.rel (%p20) target = $region8
    $region5: #{tpu_custom_call.1} parent=1 // loop_body
      %s24 = ssub.s32 %s19, 1
      %s25 = ssub.s32 %s19, 2
      %s26 = sadd.s32 %s19, 1
      %s27 = ssub.s32 %s19, %s26
      %p28 = scmp.eq.s32.totalorder %s27, 0
      %s30 = sadd.s32 %s29, 1
      %s31 = scalar_select %p28, %s29, %s30
      %p34 = pneg %p28
      %p35 = scmp.eq.s32.totalorder %s19, 1
      %p36 = por %p34, %p35
      %p37 = scmp.ne.s32.totalorder %s29, %s32
      %p38 = scmp.eq.s32.totalorder %s19, 0
      %p39 = por %p37, %p38
      %p40 = scmp.ne.s32.totalorder %s29, %s32
      %p41 = scmp.eq.s32.totalorder %s24, 1
      %p42 = por %p40, %p41
      %p43 = scmp.ne.s32.totalorder %s32, %s33
      %p44 = scmp.eq.s32.totalorder %s24, 0
      %p45 = por %p43, %p44
      %p46 = scmp.ne.s32.totalorder %s32, %s33
      %p47 = scmp.eq.s32.totalorder %s25, 1
      %p48 = por %p46, %p47
      %p50 = scmp.ne.s32.totalorder %s33, %s49
      %p51 = scmp.eq.s32.totalorder %s25, 0
      %p52 = por %p50, %p51
      %s54 = sadd.s32 %s53, 1
      %p57 = scmp.eq.s32.totalorder %s19, 1
      %p58 = scmp.ne.s32.totalorder %s53, %s55
      %p59 = scmp.eq.s32.totalorder %s19, 0
      %p60 = por %p58, %p59
      %p61 = scmp.ne.s32.totalorder %s53, %s55
      %p62 = scmp.eq.s32.totalorder %s24, 1
      %p63 = por %p61, %p62
      %p64 = scmp.ne.s32.totalorder %s55, %s56
      %p65 = scmp.eq.s32.totalorder %s24, 0
      %p66 = por %p64, %p65
      %p67 = scmp.ne.s32.totalorder %s55, %s56
      %p68 = scmp.eq.s32.totalorder %s25, 1
      %p69 = por %p67, %p68
      %p71 = scmp.ne.s32.totalorder %s56, %s70
      %p72 = scmp.eq.s32.totalorder %s25, 0
      %p73 = por %p71, %p72
      %s75 = sadd.s32 %s74, 1
      %p78 = scmp.eq.s32.totalorder %s19, 1
      %p79 = scmp.ne.s32.totalorder %s74, %s76
      %p80 = scmp.eq.s32.totalorder %s19, 0
      %p81 = por %p79, %p80
      %p82 = scmp.ne.s32.totalorder %s74, %s76
      %p83 = scmp.eq.s32.totalorder %s24, 1
      %p84 = por %p82, %p83
      %p85 = scmp.ne.s32.totalorder %s76, %s77
      %p86 = scmp.eq.s32.totalorder %s24, 0
      %p87 = por %p85, %p86
      %p88 = scmp.ne.s32.totalorder %s76, %s77
      %p89 = scmp.eq.s32.totalorder %s25, 1
      %p90 = por %p88, %p89
      %p92 = scmp.ne.s32.totalorder %s77, %s91
      %p93 = scmp.eq.s32.totalorder %s25, 0
      %p94 = por %p92, %p93
      %s95 = ssub.s32 %s19, %s26
      %p96 = scmp.eq.s32.totalorder %s95, 0
      %s98 = sadd.s32 %s97, 1
      %s99 = scalar_select %p96, %s97, %s98
      %p102 = pneg %p96
      %p103 = scmp.eq.s32.totalorder %s19, 1
      %p104 = por %p102, %p103
      %p105 = scmp.ne.s32.totalorder %s97, %s100
      %p106 = scmp.eq.s32.totalorder %s19, 0
      %p107 = por %p105, %p106
      %p108 = scmp.ne.s32.totalorder %s97, %s100
      %p109 = scmp.eq.s32.totalorder %s24, 1
      %p110 = por %p108, %p109
      %p111 = scmp.ne.s32.totalorder %s100, %s101
      %p112 = scmp.eq.s32.totalorder %s24, 0
      %p113 = por %p111, %p112
      %p114 = scmp.ne.s32.totalorder %s100, %s101
      %p115 = scmp.eq.s32.totalorder %s25, 1
      %p116 = por %p114, %p115
      %p118 = scmp.ne.s32.totalorder %s101, %s117
      %p119 = scmp.eq.s32.totalorder %s25, 0
      %p120 = por %p118, %p119
      %s122 = sadd.s32 %s121, 1
      %p125 = scmp.eq.s32.totalorder %s19, 1
      %p126 = scmp.ne.s32.totalorder %s121, %s123
      %p127 = scmp.eq.s32.totalorder %s19, 0
      %p128 = por %p126, %p127
      %p129 = scmp.ne.s32.totalorder %s121, %s123
      %p130 = scmp.eq.s32.totalorder %s24, 1
      %p131 = por %p129, %p130
      %p132 = scmp.ne.s32.totalorder %s123, %s124
      %p133 = scmp.eq.s32.totalorder %s24, 0
      %p134 = por %p132, %p133
      %p135 = scmp.ne.s32.totalorder %s123, %s124
      %p136 = scmp.eq.s32.totalorder %s25, 1
      %p137 = por %p135, %p136
      %p139 = scmp.ne.s32.totalorder %s124, %s138
      %p140 = scmp.eq.s32.totalorder %s25, 0
      %p141 = por %p139, %p140
      %s143 = sadd.s32 %s142, 1
      %p146 = scmp.eq.s32.totalorder %s19, 1
      %p147 = scmp.ne.s32.totalorder %s142, %s144
      %p148 = scmp.eq.s32.totalorder %s19, 0
      %p149 = por %p147, %p148
      %p150 = scmp.ne.s32.totalorder %s142, %s144
      %p151 = scmp.eq.s32.totalorder %s24, 1
      %p152 = por %p150, %p151
      %p153 = scmp.ne.s32.totalorder %s144, %s145
      %p154 = scmp.eq.s32.totalorder %s24, 0
      %p155 = por %p153, %p154
      %p156 = scmp.ne.s32.totalorder %s144, %s145
      %p157 = scmp.eq.s32.totalorder %s25, 1
      %p158 = por %p156, %p157
      %p160 = scmp.ne.s32.totalorder %s145, %s159
      %p161 = scmp.eq.s32.totalorder %s25, 0
      %p162 = por %p160, %p161
      %s163 = ssub.s32 %s19, %s26
      %p164 = scmp.eq.s32.totalorder %s163, 0
      %s166 = sadd.s32 %s165, 1
      %s167 = scalar_select %p164, %s165, %s166
      %p170 = pneg %p164
      %p171 = scmp.eq.s32.totalorder %s19, 1
      %p172 = por %p170, %p171
      %p173 = scmp.ne.s32.totalorder %s165, %s168
      %p174 = scmp.eq.s32.totalorder %s19, 0
      %p175 = por %p173, %p174
      %p176 = scmp.ne.s32.totalorder %s165, %s168
      %p177 = scmp.eq.s32.totalorder %s24, 1
      %p178 = por %p176, %p177
      %p179 = scmp.ne.s32.totalorder %s168, %s169
      %p180 = scmp.eq.s32.totalorder %s24, 0
      %p181 = por %p179, %p180
      %p182 = scmp.ne.s32.totalorder %s168, %s169
      %p183 = scmp.eq.s32.totalorder %s25, 1
      %p184 = por %p182, %p183
      %p186 = scmp.ne.s32.totalorder %s169, %s185
      %p187 = scmp.eq.s32.totalorder %s25, 0
      %p188 = por %p186, %p187
      %p189 = scmp.le.s32.totalorder 1, %s19
      %p190 = scmp.lt.s32.totalorder %s19, 3
      %p191 = pnand %p189, %p190
      %p192 = pneg %p191
      // Predicated region
      $region9: #{tpu_custom_call.1} parent=5 // pred_check
        _
      $region10: #{tpu_custom_call.1} parent=5 // pred_check_branch
        %194 = sbr.rel (%p191) target = $region12
      $region11: #{tpu_custom_call.1} parent=5 // pred_region
        %s195 = ssub.s32 %s19, 1
        // Predicated region
        $region13: #{tpu_custom_call.1} parent=11 // pred_check
          %p196 = pneg %p66
        $region14: #{tpu_custom_call.1} parent=11 // pred_check_branch
          %198 = sbr.rel (%p196) target = $region16
        $region15: #{tpu_custom_call.1} parent=11 // pred_region
          %s200 = ssub.s32 4096, 4096
          %201 = vsyncadd [#allocation6], %s200
          %s202 = sshll.u32 [#allocation5], 4
          %s203 = int_to_ptr.vmem [resolvable:$true] %s202
          %208 = dma.hbm_to_vmem [thread:$0]  %s1, 4096, %s203, [#allocation6], 128, 128, 8
        $region16: #{tpu_custom_call.1} parent=11 // pred_fallthru
          _
        // Predicated region
        $region17: #{tpu_custom_call.1} parent=11 // pred_check
          %p209 = pneg %p87
        $region18: #{tpu_custom_call.1} parent=11 // pred_check_branch
          %211 = sbr.rel (%p209) target = $region20
        $region19: #{tpu_custom_call.1} parent=11 // pred_region
          _
        $region20: #{tpu_custom_call.1} parent=11 // pred_fallthru
          _
        // Predicated region
        $region21: #{tpu_custom_call.1} parent=11 // pred_check
          %p212 = pneg %p134
        $region22: #{tpu_custom_call.1} parent=11 // pred_check_branch
          %214 = sbr.rel (%p212) target = $region24
        $region23: #{tpu_custom_call.1} parent=11 // pred_region
          _
        $region24: #{tpu_custom_call.1} parent=11 // pred_fallthru
          _
        // Predicated region
        $region25: #{tpu_custom_call.1} parent=11 // pred_check
          %p215 = pneg %p155
        $region26: #{tpu_custom_call.1} parent=11 // pred_check_branch
          %217 = sbr.rel (%p215) target = $region28
        $region27: #{tpu_custom_call.1} parent=11 // pred_region
          _
        $region28: #{tpu_custom_call.1} parent=11 // pred_fallthru
          _
      $region12: #{tpu_custom_call.1} parent=5 // pred_fallthru
        _
      %p218 = scmp.lt.s32.totalorder %s19, 2
      // Predicated region
      $region29: #{tpu_custom_call.1} parent=5 // pred_check
        %p219 = pneg %p218
      $region30: #{tpu_custom_call.1} parent=5 // pred_check_branch
        %221 = sbr.rel (%p219) target = $region32
      $region31: #{tpu_custom_call.1} parent=5 // pred_region
        // Predicated region
        $region33: #{tpu_custom_call.1} parent=31 // pred_check
          %p222 = pneg %p39
        $region34: #{tpu_custom_call.1} parent=31 // pred_check_branch
          %224 = sbr.rel (%p222) target = $region36
        $region35: #{tpu_custom_call.1} parent=31 // pred_region
          %s225 = sand.u32 %s19, 1
          %s226 = scalar_lea.sflag [#allocation3], %s225
          %s227 = sand.u32 %s29, 1
          %s228 = smul.addr %s227, 1024
          %s229 = scalar_lea.vmem [#allocation2], %s228
          %s230 = smul.u32 64, %s19
          %s231 = ssub.s32 80, %s230
          %p232 = scmp.lt.s32.totalorder %s231, 64
          %s233 = scalar_select %p232, %s231, 64
          %s234 = smul.u32 128, %s233
          %s235 = smul.u32 %s234, 2
          %s237 = ssub.s32 16384, %s235
          %238 = vsyncadd %s226, %s237
          %p239 = scmp.ne.s32.totalorder 0, %s235
          %s240 = smul.addr %s230, 2
          %s241 = smul.addr %s240, 128
          %s242 = scalar_lea.hbm %s0, %s241
          %s243 = smul.u32 16, %s233
          %s244 = sshll.u32 %s229, 4
          %s245 = int_to_ptr.vmem [resolvable:$true] %s244
          %s246 = sshll.u32 %s243, 4
          %250 = dma.hbm_to_vmem [thread:$0]  (%p239), %s242, %s246, %s245, %s226, 256, 256, 16
        $region36: #{tpu_custom_call.1} parent=31 // pred_fallthru
          _
        // Predicated region
        $region37: #{tpu_custom_call.1} parent=31 // pred_check
          %p251 = pneg %p107
        $region38: #{tpu_custom_call.1} parent=31 // pred_check_branch
          %253 = sbr.rel (%p251) target = $region40
        $region39: #{tpu_custom_call.1} parent=31 // pred_region
          %s254 = sand.u32 %s19, 1
          %s255 = scalar_lea.sflag [#allocation3], %s254
          %s256 = sand.u32 %s97, 1
          %s257 = smul.addr %s256, 1024
          %s258 = scalar_lea.vmem [#allocation7], %s257
          %s259 = smul.u32 64, %s19
          %s260 = ssub.s32 80, %s259
          %p261 = scmp.lt.s32.totalorder %s260, 64
          %s262 = scalar_select %p261, %s260, 64
          %s263 = smul.u32 128, %s262
          %s264 = smul.u32 %s263, 2
          %s266 = ssub.s32 16384, %s264
          %267 = vsyncadd %s255, %s266
          %p268 = scmp.ne.s32.totalorder 0, %s264
          %s269 = smul.addr %s259, 2
          %s270 = smul.addr %s269, 128
          %s271 = scalar_lea.hbm %s3, %s270
          %s272 = smul.u32 16, %s262
          %s273 = sshll.u32 %s258, 4
          %s274 = int_to_ptr.vmem [resolvable:$true] %s273
          %s275 = sshll.u32 %s272, 4
          %279 = dma.hbm_to_vmem [thread:$0]  (%p268), %s271, %s275, %s274, %s255, 256, 256, 16
        $region40: #{tpu_custom_call.1} parent=31 // pred_fallthru
          _
      $region32: #{tpu_custom_call.1} parent=5 // pred_fallthru
        _
      %p280 = scmp.le.s32.totalorder 1, %s19
      %p281 = scmp.lt.s32.totalorder %s19, 3
      %p282 = pnand %p280, %p281
      %p283 = pneg %p282
      // Predicated region
      $region41: #{tpu_custom_call.1} parent=5 // pred_check
        _
      $region42: #{tpu_custom_call.1} parent=5 // pred_check_branch
        %285 = sbr.rel (%p282) target = $region44
      $region43: #{tpu_custom_call.1} parent=5 // pred_region
        %s286 = ssub.s32 %s19, 1
        %s287 = sand.u32 %s24, 1
        %s288 = scalar_lea.sflag [#allocation3], %s287
        %s289 = sand.u32 %s32, 1
        %s290 = smul.addr %s289, 1024
        %s291 = scalar_lea.vmem [#allocation2], %s290
        // Predicated region
        $region45: #{tpu_custom_call.1} parent=43 // pred_check
          %p292 = pneg %p45
        $region46: #{tpu_custom_call.1} parent=43 // pred_check_branch
          %294 = sbr.rel (%p292) target = $region48
        $region47: #{tpu_custom_call.1} parent=43 // pred_region
          %295 = dma.done %s288, 16384
        $region48: #{tpu_custom_call.1} parent=43 // pred_fallthru
          _
        // Predicated region
        $region49: #{tpu_custom_call.1} parent=43 // pred_check
          %p296 = pneg %p66
        $region50: #{tpu_custom_call.1} parent=43 // pred_check_branch
          %298 = sbr.rel (%p296) target = $region52
        $region51: #{tpu_custom_call.1} parent=43 // pred_region
          %299 = dma.done [#allocation6], 4096
        $region52: #{tpu_custom_call.1} parent=43 // pred_fallthru
          _
        %s300 = sand.u32 %s24, 1
        %s301 = scalar_lea.sflag [#allocation3], %s300
        %s302 = sand.u32 %s100, 1
        %s303 = smul.addr %s302, 1024
        %s304 = scalar_lea.vmem [#allocation7], %s303
        // Predicated region
        $region53: #{tpu_custom_call.1} parent=43 // pred_check
          %p305 = pneg %p113
        $region54: #{tpu_custom_call.1} parent=43 // pred_check_branch
          %307 = sbr.rel (%p305) target = $region56
        $region55: #{tpu_custom_call.1} parent=43 // pred_region
          %308 = dma.done %s301, 16384
        $region56: #{tpu_custom_call.1} parent=43 // pred_fallthru
          _
        %s309 = sand.u32 %s24, 1
        %s310 = scalar_lea.sflag [#allocation3], %s309
        %s311 = sand.u32 %s32, 1
        %s312 = smul.addr %s311, 1024
        %s313 = scalar_lea.vmem [#allocation2], %s312
        %p314 = pneg %p45
        %p315 = pneg %p42
        %p316 = pneg %p66
        %p317 = pneg %p63
        %p318 = pneg %p87
        %p319 = pneg %p84
        %s320 = sand.u32 %s24, 1
        %s321 = scalar_lea.sflag [#allocation3], %s320
        %s322 = sand.u32 %s100, 1
        %s323 = smul.addr %s322, 1024
        %s324 = scalar_lea.vmem [#allocation7], %s323
        %p325 = pneg %p113
        %p326 = pneg %p110
        %p327 = pneg %p134
        %p328 = pneg %p131
        %p329 = pneg %p155
        %p330 = pneg %p152
        %p331 = pneg %p181
        %p332 = pneg %p178
        %s333 = sand.u32 %s168, 1
        %s334 = scalar_lea.sflag [#allocation4], %s333
        %s335 = sand.u32 %s168, 1
        %s336 = smul.addr %s335, 1024
        %s337 = scalar_lea.vmem [#allocation8], %s336
        %s338 = smul.u32 64, %s24
        %s339 = ssub.s32 80, %s338
        %p340 = scmp.lt.s32.totalorder %s339, 64
        %s341 = scalar_select %p340, %s339, 64
        %s342 = smul.u32 128, %s341
        %s343 = smul.u32 %s342, 2
        %s344 = smul.u32 64, %s24
        %s345 = ssub.s32 80, %s344
        %p346 = scmp.lt.s32.totalorder %s345, 64
        %s347 = scalar_select %p346, %s345, 64
        %s348 = smul.u32 128, %s347
        %s349 = smul.u32 %s348, 2
        %s350 = smul.u32 64, %s24
        %s351 = ssub.s32 80, %s350
        %p352 = scmp.lt.s32.totalorder %s351, 64
        %s353 = scalar_select %p352, %s351, 64
        %s354 = smul.u32 128, %s353
        %s355 = smul.u32 %s354, 2
        %v356 = vld [vmem:[%s291] sm:$0xff]
        %v357 = vld [vmem:[%s291 + $0x8] sm:$0xff]
        %v358 = vld [vmem:[%s291 + $0x10] sm:$0xff]
        %v359 = vld [vmem:[%s291 + $0x18] sm:$0xff]
        %v360 = vld [vmem:[%s291 + $0x20] sm:$0xff]
        %v361 = vld [vmem:[%s291 + $0x28] sm:$0xff]
        %v362 = vld [vmem:[%s291 + $0x30] sm:$0xff]
        %v363 = vld [vmem:[%s291 + $0x38] sm:$0xff]
        %v364 = vld [vmem:[%s291 + $0x40] sm:$0xff]
        %v365 = vld [vmem:[%s291 + $0x48] sm:$0xff]
        %v366 = vld [vmem:[%s291 + $0x50] sm:$0xff]
        %v367 = vld [vmem:[%s291 + $0x58] sm:$0xff]
        %v368 = vld [vmem:[%s291 + $0x60] sm:$0xff]
        %v369 = vld [vmem:[%s291 + $0x68] sm:$0xff]
        %v370 = vld [vmem:[%s291 + $0x70] sm:$0xff]
        %v371 = vld [vmem:[%s291 + $0x78] sm:$0xff]
        %v372 = vld [vmem:[%s291 + $0x80] sm:$0xff]
        %v373 = vld [vmem:[%s291 + $0x88] sm:$0xff]
        %v374 = vld [vmem:[%s291 + $0x90] sm:$0xff]
        %v375 = vld [vmem:[%s291 + $0x98] sm:$0xff]
        %v376 = vld [vmem:[%s291 + $0xa0] sm:$0xff]
        %v377 = vld [vmem:[%s291 + $0xa8] sm:$0xff]
        %v378 = vld [vmem:[%s291 + $0xb0] sm:$0xff]
        %v379 = vld [vmem:[%s291 + $0xb8] sm:$0xff]
        %v380 = vld [vmem:[%s291 + $0xc0] sm:$0xff]
        %v381 = vld [vmem:[%s291 + $0xc8] sm:$0xff]
        %v382 = vld [vmem:[%s291 + $0xd0] sm:$0xff]
        %v383 = vld [vmem:[%s291 + $0xd8] sm:$0xff]
        %v384 = vld [vmem:[%s291 + $0xe0] sm:$0xff]
        %v385 = vld [vmem:[%s291 + $0xe8] sm:$0xff]
        %v386 = vld [vmem:[%s291 + $0xf0] sm:$0xff]
        %v387 = vld [vmem:[%s291 + $0xf8] sm:$0xff]
        %v388 = vld [vmem:[%s291 + $0x100] sm:$0xff]
        %v389 = vld [vmem:[%s291 + $0x108] sm:$0xff]
        %v390 = vld [vmem:[%s291 + $0x110] sm:$0xff]
        %v391 = vld [vmem:[%s291 + $0x118] sm:$0xff]
        %v392 = vld [vmem:[%s291 + $0x120] sm:$0xff]
        %v393 = vld [vmem:[%s291 + $0x128] sm:$0xff]
        %v394 = vld [vmem:[%s291 + $0x130] sm:$0xff]
        %v395 = vld [vmem:[%s291 + $0x138] sm:$0xff]
        %v396 = vld [vmem:[%s291 + $0x140] sm:$0xff]
        %v397 = vld [vmem:[%s291 + $0x148] sm:$0xff]
        %v398 = vld [vmem:[%s291 + $0x150] sm:$0xff]
        %v399 = vld [vmem:[%s291 + $0x158] sm:$0xff]
        %v400 = vld [vmem:[%s291 + $0x160] sm:$0xff]
        %v401 = vld [vmem:[%s291 + $0x168] sm:$0xff]
        %v402 = vld [vmem:[%s291 + $0x170] sm:$0xff]
        %v403 = vld [vmem:[%s291 + $0x178] sm:$0xff]
        %v404 = vld [vmem:[%s291 + $0x180] sm:$0xff]
        %v405 = vld [vmem:[%s291 + $0x188] sm:$0xff]
        %v406 = vld [vmem:[%s291 + $0x190] sm:$0xff]
        %v407 = vld [vmem:[%s291 + $0x198] sm:$0xff]
        %v408 = vld [vmem:[%s291 + $0x1a0] sm:$0xff]
        %v409 = vld [vmem:[%s291 + $0x1a8] sm:$0xff]
        %v410 = vld [vmem:[%s291 + $0x1b0] sm:$0xff]
        %v411 = vld [vmem:[%s291 + $0x1b8] sm:$0xff]
        %v412 = vld [vmem:[%s291 + $0x1c0] sm:$0xff]
        %v413 = vld [vmem:[%s291 + $0x1c8] sm:$0xff]
        %v414 = vld [vmem:[%s291 + $0x1d0] sm:$0xff]
        %v415 = vld [vmem:[%s291 + $0x1d8] sm:$0xff]
        %v416 = vld [vmem:[%s291 + $0x1e0] sm:$0xff]
        %v417 = vld [vmem:[%s291 + $0x1e8] sm:$0xff]
        %v418 = vld [vmem:[%s291 + $0x1f0] sm:$0xff]
        %v419 = vld [vmem:[%s291 + $0x1f8] sm:$0xff]
        %v420 = vld [vmem:[%s291 + $0x200] sm:$0xff]
        %v421 = vld [vmem:[%s291 + $0x208] sm:$0xff]
        %v422 = vld [vmem:[%s291 + $0x210] sm:$0xff]
        %v423 = vld [vmem:[%s291 + $0x218] sm:$0xff]
        %v424 = vld [vmem:[%s291 + $0x220] sm:$0xff]
        %v425 = vld [vmem:[%s291 + $0x228] sm:$0xff]
        %v426 = vld [vmem:[%s291 + $0x230] sm:$0xff]
        %v427 = vld [vmem:[%s291 + $0x238] sm:$0xff]
        %v428 = vld [vmem:[%s291 + $0x240] sm:$0xff]
        %v429 = vld [vmem:[%s291 + $0x248] sm:$0xff]
        %v430 = vld [vmem:[%s291 + $0x250] sm:$0xff]
        %v431 = vld [vmem:[%s291 + $0x258] sm:$0xff]
        %v432 = vld [vmem:[%s291 + $0x260] sm:$0xff]
        %v433 = vld [vmem:[%s291 + $0x268] sm:$0xff]
        %v434 = vld [vmem:[%s291 + $0x270] sm:$0xff]
        %v435 = vld [vmem:[%s291 + $0x278] sm:$0xff]
        %v436 = vld [vmem:[%s291 + $0x280] sm:$0xff]
        %v437 = vld [vmem:[%s291 + $0x288] sm:$0xff]
        %v438 = vld [vmem:[%s291 + $0x290] sm:$0xff]
        %v439 = vld [vmem:[%s291 + $0x298] sm:$0xff]
        %v440 = vld [vmem:[%s291 + $0x2a0] sm:$0xff]
        %v441 = vld [vmem:[%s291 + $0x2a8] sm:$0xff]
        %v442 = vld [vmem:[%s291 + $0x2b0] sm:$0xff]
        %v443 = vld [vmem:[%s291 + $0x2b8] sm:$0xff]
        %v444 = vld [vmem:[%s291 + $0x2c0] sm:$0xff]
        %v445 = vld [vmem:[%s291 + $0x2c8] sm:$0xff]
        %v446 = vld [vmem:[%s291 + $0x2d0] sm:$0xff]
        %v447 = vld [vmem:[%s291 + $0x2d8] sm:$0xff]
        %v448 = vld [vmem:[%s291 + $0x2e0] sm:$0xff]
        %v449 = vld [vmem:[%s291 + $0x2e8] sm:$0xff]
        %v450 = vld [vmem:[%s291 + $0x2f0] sm:$0xff]
        %v451 = vld [vmem:[%s291 + $0x2f8] sm:$0xff]
        %v452 = vld [vmem:[%s291 + $0x300] sm:$0xff]
        %v453 = vld [vmem:[%s291 + $0x308] sm:$0xff]
        %v454 = vld [vmem:[%s291 + $0x310] sm:$0xff]
        %v455 = vld [vmem:[%s291 + $0x318] sm:$0xff]
        %v456 = vld [vmem:[%s291 + $0x320] sm:$0xff]
        %v457 = vld [vmem:[%s291 + $0x328] sm:$0xff]
        %v458 = vld [vmem:[%s291 + $0x330] sm:$0xff]
        %v459 = vld [vmem:[%s291 + $0x338] sm:$0xff]
        %v460 = vld [vmem:[%s291 + $0x340] sm:$0xff]
        %v461 = vld [vmem:[%s291 + $0x348] sm:$0xff]
        %v462 = vld [vmem:[%s291 + $0x350] sm:$0xff]
        %v463 = vld [vmem:[%s291 + $0x358] sm:$0xff]
        %v464 = vld [vmem:[%s291 + $0x360] sm:$0xff]
        %v465 = vld [vmem:[%s291 + $0x368] sm:$0xff]
        %v466 = vld [vmem:[%s291 + $0x370] sm:$0xff]
        %v467 = vld [vmem:[%s291 + $0x378] sm:$0xff]
        %v468 = vld [vmem:[%s291 + $0x380] sm:$0xff]
        %v469 = vld [vmem:[%s291 + $0x388] sm:$0xff]
        %v470 = vld [vmem:[%s291 + $0x390] sm:$0xff]
        %v471 = vld [vmem:[%s291 + $0x398] sm:$0xff]
        %v472 = vld [vmem:[%s291 + $0x3a0] sm:$0xff]
        %v473 = vld [vmem:[%s291 + $0x3a8] sm:$0xff]
        %v474 = vld [vmem:[%s291 + $0x3b0] sm:$0xff]
        %v475 = vld [vmem:[%s291 + $0x3b8] sm:$0xff]
        %v476 = vld [vmem:[%s291 + $0x3c0] sm:$0xff]
        %v477 = vld [vmem:[%s291 + $0x3c8] sm:$0xff]
        %v478 = vld [vmem:[%s291 + $0x3d0] sm:$0xff]
        %v479 = vld [vmem:[%s291 + $0x3d8] sm:$0xff]
        %v480 = vld [vmem:[%s291 + $0x3e0] sm:$0xff]
        %v481 = vld [vmem:[%s291 + $0x3e8] sm:$0xff]
        %v482 = vld [vmem:[%s291 + $0x3f0] sm:$0xff]
        %v483 = vld [vmem:[%s291 + $0x3f8] sm:$0xff]
        %v484 = vpack.c.bf16 %v358, %v356
        %v485 = vpack.c.bf16 %v359, %v357
        %v486 = vpack.c.bf16 %v362, %v360
        %v487 = vpack.c.bf16 %v363, %v361
        %v488 = vpack.c.bf16 %v366, %v364
        %v489 = vpack.c.bf16 %v367, %v365
        %v490 = vpack.c.bf16 %v370, %v368
        %v491 = vpack.c.bf16 %v371, %v369
        %v492 = vpack.c.bf16 %v374, %v372
        %v493 = vpack.c.bf16 %v375, %v373
        %v494 = vpack.c.bf16 %v378, %v376
        %v495 = vpack.c.bf16 %v379, %v377
        %v496 = vpack.c.bf16 %v382, %v380
        %v497 = vpack.c.bf16 %v383, %v381
        %v498 = vpack.c.bf16 %v386, %v384
        %v499 = vpack.c.bf16 %v387, %v385
        %v500 = vpack.c.bf16 %v390, %v388
        %v501 = vpack.c.bf16 %v391, %v389
        %v502 = vpack.c.bf16 %v394, %v392
        %v503 = vpack.c.bf16 %v395, %v393
        %v504 = vpack.c.bf16 %v398, %v396
        %v505 = vpack.c.bf16 %v399, %v397
        %v506 = vpack.c.bf16 %v402, %v400
        %v507 = vpack.c.bf16 %v403, %v401
        %v508 = vpack.c.bf16 %v406, %v404
        %v509 = vpack.c.bf16 %v407, %v405
        %v510 = vpack.c.bf16 %v410, %v408
        %v511 = vpack.c.bf16 %v411, %v409
        %v512 = vpack.c.bf16 %v414, %v412
        %v513 = vpack.c.bf16 %v415, %v413
        %v514 = vpack.c.bf16 %v418, %v416
        %v515 = vpack.c.bf16 %v419, %v417
        %v516 = vpack.c.bf16 %v422, %v420
        %v517 = vpack.c.bf16 %v423, %v421
        %v518 = vpack.c.bf16 %v426, %v424
        %v519 = vpack.c.bf16 %v427, %v425
        %v520 = vpack.c.bf16 %v430, %v428
        %v521 = vpack.c.bf16 %v431, %v429
        %v522 = vpack.c.bf16 %v434, %v432
        %v523 = vpack.c.bf16 %v435, %v433
        %v524 = vpack.c.bf16 %v438, %v436
        %v525 = vpack.c.bf16 %v439, %v437
        %v526 = vpack.c.bf16 %v442, %v440
        %v527 = vpack.c.bf16 %v443, %v441
        %v528 = vpack.c.bf16 %v446, %v444
        %v529 = vpack.c.bf16 %v447, %v445
        %v530 = vpack.c.bf16 %v450, %v448
        %v531 = vpack.c.bf16 %v451, %v449
        %v532 = vpack.c.bf16 %v454, %v452
        %v533 = vpack.c.bf16 %v455, %v453
        %v534 = vpack.c.bf16 %v458, %v456
        %v535 = vpack.c.bf16 %v459, %v457
        %v536 = vpack.c.bf16 %v462, %v460
        %v537 = vpack.c.bf16 %v463, %v461
        %v538 = vpack.c.bf16 %v466, %v464
        %v539 = vpack.c.bf16 %v467, %v465
        %v540 = vpack.c.bf16 %v470, %v468
        %v541 = vpack.c.bf16 %v471, %v469
        %v542 = vpack.c.bf16 %v474, %v472
        %v543 = vpack.c.bf16 %v475, %v473
        %v544 = vpack.c.bf16 %v478, %v476
        %v545 = vpack.c.bf16 %v479, %v477
        %v546 = vpack.c.bf16 %v482, %v480
        %v547 = vpack.c.bf16 %v483, %v481
        %v548 = vld [vmem:[#allocation5] sm:$0xff]
        %v549 = vld [vmem:[#allocation5 + $0x8] sm:$0xff]
        %v550 = vld [vmem:[#allocation5 + $0x10] sm:$0xff]
        %v551 = vld [vmem:[#allocation5 + $0x18] sm:$0xff]
        %v552 = vld [vmem:[#allocation5 + $0x20] sm:$0xff]
        %v553 = vld [vmem:[#allocation5 + $0x28] sm:$0xff]
        %v554 = vld [vmem:[#allocation5 + $0x30] sm:$0xff]
        %v555 = vld [vmem:[#allocation5 + $0x38] sm:$0xff]
        %v556 = vld [vmem:[#allocation5 + $0x40] sm:$0xff]
        %v557 = vld [vmem:[#allocation5 + $0x48] sm:$0xff]
        %v558 = vld [vmem:[#allocation5 + $0x50] sm:$0xff]
        %v559 = vld [vmem:[#allocation5 + $0x58] sm:$0xff]
        %v560 = vld [vmem:[#allocation5 + $0x60] sm:$0xff]
        %v561 = vld [vmem:[#allocation5 + $0x68] sm:$0xff]
        %v562 = vld [vmem:[#allocation5 + $0x70] sm:$0xff]
        %v563 = vld [vmem:[#allocation5 + $0x78] sm:$0xff]
        %v564 = vld [vmem:[#allocation5 + $0x80] sm:$0xff]
        %v565 = vld [vmem:[#allocation5 + $0x88] sm:$0xff]
        %v566 = vld [vmem:[#allocation5 + $0x90] sm:$0xff]
        %v567 = vld [vmem:[#allocation5 + $0x98] sm:$0xff]
        %v568 = vld [vmem:[#allocation5 + $0xa0] sm:$0xff]
        %v569 = vld [vmem:[#allocation5 + $0xa8] sm:$0xff]
        %v570 = vld [vmem:[#allocation5 + $0xb0] sm:$0xff]
        %v571 = vld [vmem:[#allocation5 + $0xb8] sm:$0xff]
        %v572 = vld [vmem:[#allocation5 + $0xc0] sm:$0xff]
        %v573 = vld [vmem:[#allocation5 + $0xc8] sm:$0xff]
        %v574 = vld [vmem:[#allocation5 + $0xd0] sm:$0xff]
        %v575 = vld [vmem:[#allocation5 + $0xd8] sm:$0xff]
        %v576 = vld [vmem:[#allocation5 + $0xe0] sm:$0xff]
        %v577 = vld [vmem:[#allocation5 + $0xe8] sm:$0xff]
        %v578 = vld [vmem:[#allocation5 + $0xf0] sm:$0xff]
        %v579 = vld [vmem:[#allocation5 + $0xf8] sm:$0xff]
        %v580 = vld [vmem:[%s2] sm:$0x3]
        %v582 = vlaneseq
        %v583 = vshrl.u32 %v582, 7
        %v584 = vsub.s32 0, %v583
        %v585 = vrot.slane %v580, %v584
        %v586 = vlaneseq
        %v587 = vshrl.u32 %v586, 7
        %v588 = vsub.s32 1, %v587
        %v589 = vrot.slane %v580, %v588
        %v624 = vunpack.c.l.b16 %v548
        %v625 = vunpack.c.h.b16 %v548
        %v626 = vunpack.c.l.b16 %v549
        %v627 = vunpack.c.h.b16 %v549
        %v628 = vunpack.c.l.b16 %v550
        %v629 = vunpack.c.h.b16 %v550
        %v630 = vunpack.c.l.b16 %v551
        %v631 = vunpack.c.h.b16 %v551
        %v632 = vunpack.c.l.b16 %v552
        %v633 = vunpack.c.h.b16 %v552
        %v634 = vunpack.c.l.b16 %v553
        %v635 = vunpack.c.h.b16 %v553
        %v636 = vunpack.c.l.b16 %v554
        %v637 = vunpack.c.h.b16 %v554
        %v638 = vunpack.c.l.b16 %v555
        %v639 = vunpack.c.h.b16 %v555
        %v640 = vunpack.c.l.b16 %v556
        %v641 = vunpack.c.h.b16 %v556
        %v642 = vunpack.c.l.b16 %v557
        %v643 = vunpack.c.h.b16 %v557
        %v644 = vunpack.c.l.b16 %v558
        %v645 = vunpack.c.h.b16 %v558
        %v646 = vunpack.c.l.b16 %v559
        %v647 = vunpack.c.h.b16 %v559
        %v648 = vunpack.c.l.b16 %v560
        %v649 = vunpack.c.h.b16 %v560
        %v650 = vunpack.c.l.b16 %v561
        %v651 = vunpack.c.h.b16 %v561
        %v652 = vunpack.c.l.b16 %v562
        %v653 = vunpack.c.h.b16 %v562
        %v654 = vunpack.c.l.b16 %v563
        %v655 = vunpack.c.h.b16 %v563
        %v656 = vunpack.c.l.b16 %v564
        %v657 = vunpack.c.h.b16 %v564
        %v658 = vunpack.c.l.b16 %v565
        %v659 = vunpack.c.h.b16 %v565
        %v660 = vunpack.c.l.b16 %v566
        %v661 = vunpack.c.h.b16 %v566
        %v662 = vunpack.c.l.b16 %v567
        %v663 = vunpack.c.h.b16 %v567
        %v664 = vunpack.c.l.b16 %v568
        %v665 = vunpack.c.h.b16 %v568
        %v666 = vunpack.c.l.b16 %v569
        %v667 = vunpack.c.h.b16 %v569
        %v668 = vunpack.c.l.b16 %v570
        %v669 = vunpack.c.h.b16 %v570
        %v670 = vunpack.c.l.b16 %v571
        %v671 = vunpack.c.h.b16 %v571
        %v672 = vunpack.c.l.b16 %v572
        %v673 = vunpack.c.h.b16 %v572
        %v674 = vunpack.c.l.b16 %v573
        %v675 = vunpack.c.h.b16 %v573
        %v676 = vunpack.c.l.b16 %v574
        %v677 = vunpack.c.h.b16 %v574
        %v678 = vunpack.c.l.b16 %v575
        %v679 = vunpack.c.h.b16 %v575
        %v680 = vunpack.c.l.b16 %v576
        %v681 = vunpack.c.h.b16 %v576
        %v682 = vunpack.c.l.b16 %v577
        %v683 = vunpack.c.h.b16 %v577
        %v684 = vunpack.c.l.b16 %v578
        %v685 = vunpack.c.h.b16 %v578
        %v686 = vunpack.c.l.b16 %v579
        %v687 = vunpack.c.h.b16 %v579
        %v688 = vpack.c.b16 %v626, %v624
        %v689 = vpack.c.b16 %v627, %v625
        %v690 = vpack.c.b16 %v630, %v628
        %v691 = vpack.c.b16 %v631, %v629
        %v692 = vpack.c.b16 %v634, %v632
        %v693 = vpack.c.b16 %v635, %v633
        %v694 = vpack.c.b16 %v638, %v636
        %v695 = vpack.c.b16 %v639, %v637
        %v696 = vpack.c.b16 %v642, %v640
        %v697 = vpack.c.b16 %v643, %v641
        %v698 = vpack.c.b16 %v646, %v644
        %v699 = vpack.c.b16 %v647, %v645
        %v700 = vpack.c.b16 %v650, %v648
        %v701 = vpack.c.b16 %v651, %v649
        %v702 = vpack.c.b16 %v654, %v652
        %v703 = vpack.c.b16 %v655, %v653
        %v704 = vpack.c.b16 %v658, %v656
        %v705 = vpack.c.b16 %v659, %v657
        %v706 = vpack.c.b16 %v662, %v660
        %v707 = vpack.c.b16 %v663, %v661
        %v708 = vpack.c.b16 %v666, %v664
        %v709 = vpack.c.b16 %v667, %v665
        %v710 = vpack.c.b16 %v670, %v668
        %v711 = vpack.c.b16 %v671, %v669
        %v712 = vpack.c.b16 %v674, %v672
        %v713 = vpack.c.b16 %v675, %v673
        %v714 = vpack.c.b16 %v678, %v676
        %v715 = vpack.c.b16 %v679, %v677
        %v716 = vpack.c.b16 %v682, %v680
        %v717 = vpack.c.b16 %v683, %v681
        %v718 = vpack.c.b16 %v686, %v684
        %v719 = vpack.c.b16 %v687, %v685
        %752 = vmatprep.subr.bf16.mxu0 %v689
        %753 = vmatpush1.bf16.msra.mxu0 %v688
        %754 = vmatprep.subr.bf16.mxu0 %v691
        %755 = vmatpush1.bf16.msra.mxu0 %v690
        %756 = vmatprep.subr.bf16.mxu0 %v693
        %757 = vmatpush1.bf16.msra.mxu0 %v692
        %758 = vmatprep.subr.bf16.mxu0 %v695
        %759 = vmatpush1.bf16.msra.mxu0 %v694
        %760 = vmatprep.subr.bf16.mxu0 %v697
        %761 = vmatpush1.bf16.msra.mxu0 %v696
        %762 = vmatprep.subr.bf16.mxu0 %v699
        %763 = vmatpush1.bf16.msra.mxu0 %v698
        %764 = vmatprep.subr.bf16.mxu0 %v701
        %765 = vmatpush1.bf16.msra.mxu0 %v700
        %766 = vmatprep.subr.bf16.mxu0 %v703
        %767 = vmatpush1.bf16.msra.mxu0 %v702
        %768 = vmatprep.subr.bf16.mxu0 %v705
        %769 = vmatpush1.bf16.msra.mxu0 %v704
        %770 = vmatprep.subr.bf16.mxu0 %v707
        %771 = vmatpush1.bf16.msra.mxu0 %v706
        %772 = vmatprep.subr.bf16.mxu0 %v709
        %773 = vmatpush1.bf16.msra.mxu0 %v708
        %774 = vmatprep.subr.bf16.mxu0 %v711
        %775 = vmatpush1.bf16.msra.mxu0 %v710
        %776 = vmatprep.subr.bf16.mxu0 %v713
        %777 = vmatpush1.bf16.msra.mxu0 %v712
        %778 = vmatprep.subr.bf16.mxu0 %v715
        %779 = vmatpush1.bf16.msra.mxu0 %v714
        %780 = vmatprep.subr.bf16.mxu0 %v717
        %781 = vmatpush1.bf16.msra.mxu0 %v716
        %782 = vmatprep.subr.bf16.mxu0 %v719
        %783 = vmatpush1.bf16.msra.mxu0 %v718
        %784 = vmatprep.mubr.bf16.mxu0 %v485
        %785 = vmatmul.mubr.bf16.gmra.mrb[0].mxu0 %v484
        %v786 = vpop.f32.mrb[0].mxu0
        %v787 = vadd.f32 %v585, %v786
        %v788 = vpop.f32.mrb[0].mxu0
        %v789 = vadd.f32 %v589, %v788
        %v790 = vpop.f32.mrb[0].mxu0
        %v791 = vadd.f32 %v585, %v790
        %v792 = vpop.f32.mrb[0].mxu0
        %v793 = vadd.f32 %v589, %v792
        %794 = vmatprep.mubr.bf16.mxu0 %v487
        %795 = vmatmul.mubr.bf16.gmra.mrb[0].mxu0 %v486
        %v796 = vpop.f32.mrb[0].mxu0
        %v797 = vadd.f32 %v585, %v796
        %v798 = vpop.f32.mrb[0].mxu0
        %v799 = vadd.f32 %v589, %v798
        %v800 = vpop.f32.mrb[0].mxu0
        %v801 = vadd.f32 %v585, %v800
        %v802 = vpop.f32.mrb[0].mxu0
        %v803 = vadd.f32 %v589, %v802
        %804 = vmatprep.mubr.bf16.mxu0 %v489
        %805 = vmatmul.mubr.bf16.gmra.mrb[0].mxu0 %v488
        %v806 = vpop.f32.mrb[0].mxu0
        %v807 = vadd.f32 %v585, %v806
        %v808 = vpop.f32.mrb[0].mxu0
        %v809 = vadd.f32 %v589, %v808
        %v810 = vpop.f32.mrb[0].mxu0
        %v811 = vadd.f32 %v585, %v810
        %v812 = vpop.f32.mrb[0].mxu0
        %v813 = vadd.f32 %v589, %v812
        %814 = vmatprep.mubr.bf16.mxu0 %v491
        %815 = vmatmul.mubr.bf16.gmra.mrb[0].mxu0 %v490
        %v816 = vpop.f32.mrb[0].mxu0
        %v817 = vadd.f32 %v585, %v816
        %v818 = vpop.f32.mrb[0].mxu0
        %v819 = vadd.f32 %v589, %v818
        %v820 = vpop.f32.mrb[0].mxu0
        %v821 = vadd.f32 %v585, %v820
        %v822 = vpop.f32.mrb[0].mxu0
        %v823 = vadd.f32 %v589, %v822
        %824 = vmatprep.mubr.bf16.mxu0 %v493
        %825 = vmatmul.mubr.bf16.gmra.mrb[0].mxu0 %v492
        %v826 = vpop.f32.mrb[0].mxu0
        %v827 = vadd.f32 %v585, %v826
        %v828 = vpop.f32.mrb[0].mxu0
        %v829 = vadd.f32 %v589, %v828
        %v830 = vpop.f32.mrb[0].mxu0
        %v831 = vadd.f32 %v585, %v830
        %v832 = vpop.f32.mrb[0].mxu0
        %v833 = vadd.f32 %v589, %v832
        %834 = vmatprep.mubr.bf16.mxu0 %v495
        %835 = vmatmul.mubr.bf16.gmra.mrb[0].mxu0 %v494
        %v836 = vpop.f32.mrb[0].mxu0
        %v837 = vadd.f32 %v585, %v836
        %v838 = vpop.f32.mrb[0].mxu0
        %v839 = vadd.f32 %v589, %v838
        %v840 = vpop.f32.mrb[0].mxu0
        %v841 = vadd.f32 %v585, %v840
        %v842 = vpop.f32.mrb[0].mxu0
        %v843 = vadd.f32 %v589, %v842
        %844 = vmatprep.mubr.bf16.mxu0 %v497
        %845 = vmatmul.mubr.bf16.gmra.mrb[0].mxu0 %v496
        %v846 = vpop.f32.mrb[0].mxu0
        %v847 = vadd.f32 %v585, %v846
        %v848 = vpop.f32.mrb[0].mxu0
        %v849 = vadd.f32 %v589, %v848
        %v850 = vpop.f32.mrb[0].mxu0
        %v851 = vadd.f32 %v585, %v850
        %v852 = vpop.f32.mrb[0].mxu0
        %v853 = vadd.f32 %v589, %v852
        %854 = vmatprep.mubr.bf16.mxu0 %v499
        %855 = vmatmul.mubr.bf16.gmra.mrb[0].mxu0 %v498
        %v856 = vpop.f32.mrb[0].mxu0
        %v857 = vadd.f32 %v585, %v856
        %v858 = vpop.f32.mrb[0].mxu0
        %v859 = vadd.f32 %v589, %v858
        %v860 = vpop.f32.mrb[0].mxu0
        %v861 = vadd.f32 %v585, %v860
        %v862 = vpop.f32.mrb[0].mxu0
        %v863 = vadd.f32 %v589, %v862
        %864 = vmatprep.mubr.bf16.mxu0 %v501
        %865 = vmatmul.mubr.bf16.gmra.mrb[0].mxu0 %v500
        %v866 = vpop.f32.mrb[0].mxu0
        %v867 = vadd.f32 %v585, %v866
        %v868 = vpop.f32.mrb[0].mxu0
        %v869 = vadd.f32 %v589, %v868
        %v870 = vpop.f32.mrb[0].mxu0
        %v871 = vadd.f32 %v585, %v870
        %v872 = vpop.f32.mrb[0].mxu0
        %v873 = vadd.f32 %v589, %v872
        %874 = vmatprep.mubr.bf16.mxu0 %v503
        %875 = vmatmul.mubr.bf16.gmra.mrb[0].mxu0 %v502
        %v876 = vpop.f32.mrb[0].mxu0
        %v877 = vadd.f32 %v585, %v876
        %v878 = vpop.f32.mrb[0].mxu0
        %v879 = vadd.f32 %v589, %v878
        %v880 = vpop.f32.mrb[0].mxu0
        %v881 = vadd.f32 %v585, %v880
        %v882 = vpop.f32.mrb[0].mxu0
        %v883 = vadd.f32 %v589, %v882
        %884 = vmatprep.mubr.bf16.mxu0 %v505
        %885 = vmatmul.mubr.bf16.gmra.mrb[0].mxu0 %v504
        %v886 = vpop.f32.mrb[0].mxu0
        %v887 = vadd.f32 %v585, %v886
        %v888 = vpop.f32.mrb[0].mxu0
        %v889 = vadd.f32 %v589, %v888
        %v890 = vpop.f32.mrb[0].mxu0
        %v891 = vadd.f32 %v585, %v890
        %v892 = vpop.f32.mrb[0].mxu0
        %v893 = vadd.f32 %v589, %v892
        %894 = vmatprep.mubr.bf16.mxu0 %v507
        %895 = vmatmul.mubr.bf16.gmra.mrb[0].mxu0 %v506
        %v896 = vpop.f32.mrb[0].mxu0
        %v897 = vadd.f32 %v585, %v896
        %v898 = vpop.f32.mrb[0].mxu0
        %v899 = vadd.f32 %v589, %v898
        %v900 = vpop.f32.mrb[0].mxu0
        %v901 = vadd.f32 %v585, %v900
        %v902 = vpop.f32.mrb[0].mxu0
        %v903 = vadd.f32 %v589, %v902
        %904 = vmatprep.mubr.bf16.mxu0 %v509
        %905 = vmatmul.mubr.bf16.gmra.mrb[0].mxu0 %v508
        %v906 = vpop.f32.mrb[0].mxu0
        %v907 = vadd.f32 %v585, %v906
        %v908 = vpop.f32.mrb[0].mxu0
        %v909 = vadd.f32 %v589, %v908
        %v910 = vpop.f32.mrb[0].mxu0
        %v911 = vadd.f32 %v585, %v910
        %v912 = vpop.f32.mrb[0].mxu0
        %v913 = vadd.f32 %v589, %v912
        %914 = vmatprep.mubr.bf16.mxu0 %v511
        %915 = vmatmul.mubr.bf16.gmra.mrb[0].mxu0 %v510
        %v916 = vpop.f32.mrb[0].mxu0
        %v917 = vadd.f32 %v585, %v916
        %v918 = vpop.f32.mrb[0].mxu0
        %v919 = vadd.f32 %v589, %v918
        %v920 = vpop.f32.mrb[0].mxu0
        %v921 = vadd.f32 %v585, %v920
        %v922 = vpop.f32.mrb[0].mxu0
        %v923 = vadd.f32 %v589, %v922
        %924 = vmatprep.mubr.bf16.mxu0 %v513
        %925 = vmatmul.mubr.bf16.gmra.mrb[0].mxu0 %v512
        %v926 = vpop.f32.mrb[0].mxu0
        %v927 = vadd.f32 %v585, %v926
        %v928 = vpop.f32.mrb[0].mxu0
        %v929 = vadd.f32 %v589, %v928
        %v930 = vpop.f32.mrb[0].mxu0
        %v931 = vadd.f32 %v585, %v930
        %v932 = vpop.f32.mrb[0].mxu0
        %v933 = vadd.f32 %v589, %v932
        %934 = vmatprep.mubr.bf16.mxu0 %v515
        %935 = vmatmul.mubr.bf16.gmra.mrb[0].mxu0 %v514
        %v936 = vpop.f32.mrb[0].mxu0
        %v937 = vadd.f32 %v585, %v936
        %v938 = vpop.f32.mrb[0].mxu0
        %v939 = vadd.f32 %v589, %v938
        %v940 = vpop.f32.mrb[0].mxu0
        %v941 = vadd.f32 %v585, %v940
        %v942 = vpop.f32.mrb[0].mxu0
        %v943 = vadd.f32 %v589, %v942
        %944 = vmatprep.mubr.bf16.mxu0 %v517
        %945 = vmatmul.mubr.bf16.gmra.mrb[0].mxu0 %v516
        %v946 = vpop.f32.mrb[0].mxu0
        %v947 = vadd.f32 %v585, %v946
        %v948 = vpop.f32.mrb[0].mxu0
        %v949 = vadd.f32 %v589, %v948
        %v950 = vpop.f32.mrb[0].mxu0
        %v951 = vadd.f32 %v585, %v950
        %v952 = vpop.f32.mrb[0].mxu0
        %v953 = vadd.f32 %v589, %v952
        %954 = vmatprep.mubr.bf16.mxu0 %v519
        %955 = vmatmul.mubr.bf16.gmra.mrb[0].mxu0 %v518
        %v956 = vpop.f32.mrb[0].mxu0
        %v957 = vadd.f32 %v585, %v956
        %v958 = vpop.f32.mrb[0].mxu0
        %v959 = vadd.f32 %v589, %v958
        %v960 = vpop.f32.mrb[0].mxu0
        %v961 = vadd.f32 %v585, %v960
        %v962 = vpop.f32.mrb[0].mxu0
        %v963 = vadd.f32 %v589, %v962
        %964 = vmatprep.mubr.bf16.mxu0 %v521
        %965 = vmatmul.mubr.bf16.gmra.mrb[0].mxu0 %v520
        %v966 = vpop.f32.mrb[0].mxu0
        %v967 = vadd.f32 %v585, %v966
        %v968 = vpop.f32.mrb[0].mxu0
        %v969 = vadd.f32 %v589, %v968
        %v970 = vpop.f32.mrb[0].mxu0
        %v971 = vadd.f32 %v585, %v970
        %v972 = vpop.f32.mrb[0].mxu0
        %v973 = vadd.f32 %v589, %v972
        %974 = vmatprep.mubr.bf16.mxu0 %v523
        %975 = vmatmul.mubr.bf16.gmra.mrb[0].mxu0 %v522
        %v976 = vpop.f32.mrb[0].mxu0
        %v977 = vadd.f32 %v585, %v976
        %v978 = vpop.f32.mrb[0].mxu0
        %v979 = vadd.f32 %v589, %v978
        %v980 = vpop.f32.mrb[0].mxu0
        %v981 = vadd.f32 %v585, %v980
        %v982 = vpop.f32.mrb[0].mxu0
        %v983 = vadd.f32 %v589, %v982
        %984 = vmatprep.mubr.bf16.mxu0 %v525
        %985 = vmatmul.mubr.bf16.gmra.mrb[0].mxu0 %v524
        %v986 = vpop.f32.mrb[0].mxu0
        %v987 = vadd.f32 %v585, %v986
        %v988 = vpop.f32.mrb[0].mxu0
        %v989 = vadd.f32 %v589, %v988
        %v990 = vpop.f32.mrb[0].mxu0
        %v991 = vadd.f32 %v585, %v990
        %v992 = vpop.f32.mrb[0].mxu0
        %v993 = vadd.f32 %v589, %v992
        %994 = vmatprep.mubr.bf16.mxu0 %v527
        %995 = vmatmul.mubr.bf16.gmra.mrb[0].mxu0 %v526
        %v996 = vpop.f32.mrb[0].mxu0
        %v997 = vadd.f32 %v585, %v996
        %v998 = vpop.f32.mrb[0].mxu0
        %v999 = vadd.f32 %v589, %v998
        %v1000 = vpop.f32.mrb[0].mxu0
        %v1001 = vadd.f32 %v585, %v1000
        %v1002 = vpop.f32.mrb[0].mxu0
        %v1003 = vadd.f32 %v589, %v1002
        %1004 = vmatprep.mubr.bf16.mxu0 %v529
        %1005 = vmatmul.mubr.bf16.gmra.mrb[0].mxu0 %v528
        %v1006 = vpop.f32.mrb[0].mxu0
        %v1007 = vadd.f32 %v585, %v1006
        %v1008 = vpop.f32.mrb[0].mxu0
        %v1009 = vadd.f32 %v589, %v1008
        %v1010 = vpop.f32.mrb[0].mxu0
        %v1011 = vadd.f32 %v585, %v1010
        %v1012 = vpop.f32.mrb[0].mxu0
        %v1013 = vadd.f32 %v589, %v1012
        %1014 = vmatprep.mubr.bf16.mxu0 %v531
        %1015 = vmatmul.mubr.bf16.gmra.mrb[0].mxu0 %v530
        %v1016 = vpop.f32.mrb[0].mxu0
        %v1017 = vadd.f32 %v585, %v1016
        %v1018 = vpop.f32.mrb[0].mxu0
        %v1019 = vadd.f32 %v589, %v1018
        %v1020 = vpop.f32.mrb[0].mxu0
        %v1021 = vadd.f32 %v585, %v1020
        %v1022 = vpop.f32.mrb[0].mxu0
        %v1023 = vadd.f32 %v589, %v1022
        %1024 = vmatprep.mubr.bf16.mxu0 %v533
        %1025 = vmatmul.mubr.bf16.gmra.mrb[0].mxu0 %v532
        %v1026 = vpop.f32.mrb[0].mxu0
        %v1027 = vadd.f32 %v585, %v1026
        %v1028 = vpop.f32.mrb[0].mxu0
        %v1029 = vadd.f32 %v589, %v1028
        %v1030 = vpop.f32.mrb[0].mxu0
        %v1031 = vadd.f32 %v585, %v1030
        %v1032 = vpop.f32.mrb[0].mxu0
        %v1033 = vadd.f32 %v589, %v1032
        %1034 = vmatprep.mubr.bf16.mxu0 %v535
        %1035 = vmatmul.mubr.bf16.gmra.mrb[0].mxu0 %v534
        %v1036 = vpop.f32.mrb[0].mxu0
        %v1037 = vadd.f32 %v585, %v1036
        %v1038 = vpop.f32.mrb[0].mxu0
        %v1039 = vadd.f32 %v589, %v1038
        %v1040 = vpop.f32.mrb[0].mxu0
        %v1041 = vadd.f32 %v585, %v1040
        %v1042 = vpop.f32.mrb[0].mxu0
        %v1043 = vadd.f32 %v589, %v1042
        %1044 = vmatprep.mubr.bf16.mxu0 %v537
        %1045 = vmatmul.mubr.bf16.gmra.mrb[0].mxu0 %v536
        %v1046 = vpop.f32.mrb[0].mxu0
        %v1047 = vadd.f32 %v585, %v1046
        %v1048 = vpop.f32.mrb[0].mxu0
        %v1049 = vadd.f32 %v589, %v1048
        %v1050 = vpop.f32.mrb[0].mxu0
        %v1051 = vadd.f32 %v585, %v1050
        %v1052 = vpop.f32.mrb[0].mxu0
        %v1053 = vadd.f32 %v589, %v1052
        %1054 = vmatprep.mubr.bf16.mxu0 %v539
        %1055 = vmatmul.mubr.bf16.gmra.mrb[0].mxu0 %v538
        %v1056 = vpop.f32.mrb[0].mxu0
        %v1057 = vadd.f32 %v585, %v1056
        %v1058 = vpop.f32.mrb[0].mxu0
        %v1059 = vadd.f32 %v589, %v1058
        %v1060 = vpop.f32.mrb[0].mxu0
        %v1061 = vadd.f32 %v585, %v1060
        %v1062 = vpop.f32.mrb[0].mxu0
        %v1063 = vadd.f32 %v589, %v1062
        %1064 = vmatprep.mubr.bf16.mxu0 %v541
        %1065 = vmatmul.mubr.bf16.gmra.mrb[0].mxu0 %v540
        %v1066 = vpop.f32.mrb[0].mxu0
        %v1067 = vadd.f32 %v585, %v1066
        %v1068 = vpop.f32.mrb[0].mxu0
        %v1069 = vadd.f32 %v589, %v1068
        %v1070 = vpop.f32.mrb[0].mxu0
        %v1071 = vadd.f32 %v585, %v1070
        %v1072 = vpop.f32.mrb[0].mxu0
        %v1073 = vadd.f32 %v589, %v1072
        %1074 = vmatprep.mubr.bf16.mxu0 %v543
        %1075 = vmatmul.mubr.bf16.gmra.mrb[0].mxu0 %v542
        %v1076 = vpop.f32.mrb[0].mxu0
        %v1077 = vadd.f32 %v585, %v1076
        %v1078 = vpop.f32.mrb[0].mxu0
        %v1079 = vadd.f32 %v589, %v1078
        %v1080 = vpop.f32.mrb[0].mxu0
        %v1081 = vadd.f32 %v585, %v1080
        %v1082 = vpop.f32.mrb[0].mxu0
        %v1083 = vadd.f32 %v589, %v1082
        %1084 = vmatprep.mubr.bf16.mxu0 %v545
        %1085 = vmatmul.mubr.bf16.gmra.mrb[0].mxu0 %v544
        %v1086 = vpop.f32.mrb[0].mxu0
        %v1087 = vadd.f32 %v585, %v1086
        %v1088 = vpop.f32.mrb[0].mxu0
        %v1089 = vadd.f32 %v589, %v1088
        %v1090 = vpop.f32.mrb[0].mxu0
        %v1091 = vadd.f32 %v585, %v1090
        %v1092 = vpop.f32.mrb[0].mxu0
        %v1093 = vadd.f32 %v589, %v1092
        %1094 = vmatprep.mubr.bf16.mxu0 %v547
        %1095 = vmatmul.mubr.bf16.gmra.mrb[0].mxu0 %v546
        %v1096 = vpop.f32.mrb[0].mxu0
        %v1097 = vadd.f32 %v585, %v1096
        %v1098 = vpop.f32.mrb[0].mxu0
        %v1099 = vadd.f32 %v589, %v1098
        %v1100 = vpop.f32.mrb[0].mxu0
        %v1101 = vadd.f32 %v585, %v1100
        %v1102 = vpop.f32.mrb[0].mxu0
        %v1103 = vadd.f32 %v589, %v1102
        %1104 = vdwg.mxu0
        %v1105 = vld [vmem:[%s304] sm:$0xff]
        %v1106 = vld [vmem:[%s304 + $0x8] sm:$0xff]
        %v1107 = vld [vmem:[%s304 + $0x10] sm:$0xff]
        %v1108 = vld [vmem:[%s304 + $0x18] sm:$0xff]
        %v1109 = vld [vmem:[%s304 + $0x20] sm:$0xff]
        %v1110 = vld [vmem:[%s304 + $0x28] sm:$0xff]
        %v1111 = vld [vmem:[%s304 + $0x30] sm:$0xff]
        %v1112 = vld [vmem:[%s304 + $0x38] sm:$0xff]
        %v1113 = vld [vmem:[%s304 + $0x40] sm:$0xff]
        %v1114 = vld [vmem:[%s304 + $0x48] sm:$0xff]
        %v1115 = vld [vmem:[%s304 + $0x50] sm:$0xff]
        %v1116 = vld [vmem:[%s304 + $0x58] sm:$0xff]
        %v1117 = vld [vmem:[%s304 + $0x60] sm:$0xff]
        %v1118 = vld [vmem:[%s304 + $0x68] sm:$0xff]
        %v1119 = vld [vmem:[%s304 + $0x70] sm:$0xff]
        %v1120 = vld [vmem:[%s304 + $0x78] sm:$0xff]
        %v1121 = vld [vmem:[%s304 + $0x80] sm:$0xff]
        %v1122 = vld [vmem:[%s304 + $0x88] sm:$0xff]
        %v1123 = vld [vmem:[%s304 + $0x90] sm:$0xff]
        %v1124 = vld [vmem:[%s304 + $0x98] sm:$0xff]
        %v1125 = vld [vmem:[%s304 + $0xa0] sm:$0xff]
        %v1126 = vld [vmem:[%s304 + $0xa8] sm:$0xff]
        %v1127 = vld [vmem:[%s304 + $0xb0] sm:$0xff]
        %v1128 = vld [vmem:[%s304 + $0xb8] sm:$0xff]
        %v1129 = vld [vmem:[%s304 + $0xc0] sm:$0xff]
        %v1130 = vld [vmem:[%s304 + $0xc8] sm:$0xff]
        %v1131 = vld [vmem:[%s304 + $0xd0] sm:$0xff]
        %v1132 = vld [vmem:[%s304 + $0xd8] sm:$0xff]
        %v1133 = vld [vmem:[%s304 + $0xe0] sm:$0xff]
        %v1134 = vld [vmem:[%s304 + $0xe8] sm:$0xff]
        %v1135 = vld [vmem:[%s304 + $0xf0] sm:$0xff]
        %v1136 = vld [vmem:[%s304 + $0xf8] sm:$0xff]
        %v1137 = vld [vmem:[%s304 + $0x100] sm:$0xff]
        %v1138 = vld [vmem:[%s304 + $0x108] sm:$0xff]
        %v1139 = vld [vmem:[%s304 + $0x110] sm:$0xff]
        %v1140 = vld [vmem:[%s304 + $0x118] sm:$0xff]
        %v1141 = vld [vmem:[%s304 + $0x120] sm:$0xff]
        %v1142 = vld [vmem:[%s304 + $0x128] sm:$0xff]
        %v1143 = vld [vmem:[%s304 + $0x130] sm:$0xff]
        %v1144 = vld [vmem:[%s304 + $0x138] sm:$0xff]
        %v1145 = vld [vmem:[%s304 + $0x140] sm:$0xff]
        %v1146 = vld [vmem:[%s304 + $0x148] sm:$0xff]
        %v1147 = vld [vmem:[%s304 + $0x150] sm:$0xff]
        %v1148 = vld [vmem:[%s304 + $0x158] sm:$0xff]
        %v1149 = vld [vmem:[%s304 + $0x160] sm:$0xff]
        %v1150 = vld [vmem:[%s304 + $0x168] sm:$0xff]
        %v1151 = vld [vmem:[%s304 + $0x170] sm:$0xff]
        %v1152 = vld [vmem:[%s304 + $0x178] sm:$0xff]
        %v1153 = vld [vmem:[%s304 + $0x180] sm:$0xff]
        %v1154 = vld [vmem:[%s304 + $0x188] sm:$0xff]
        %v1155 = vld [vmem:[%s304 + $0x190] sm:$0xff]
        %v1156 = vld [vmem:[%s304 + $0x198] sm:$0xff]
        %v1157 = vld [vmem:[%s304 + $0x1a0] sm:$0xff]
        %v1158 = vld [vmem:[%s304 + $0x1a8] sm:$0xff]
        %v1159 = vld [vmem:[%s304 + $0x1b0] sm:$0xff]
        %v1160 = vld [vmem:[%s304 + $0x1b8] sm:$0xff]
        %v1161 = vld [vmem:[%s304 + $0x1c0] sm:$0xff]
        %v1162 = vld [vmem:[%s304 + $0x1c8] sm:$0xff]
        %v1163 = vld [vmem:[%s304 + $0x1d0] sm:$0xff]
        %v1164 = vld [vmem:[%s304 + $0x1d8] sm:$0xff]
        %v1165 = vld [vmem:[%s304 + $0x1e0] sm:$0xff]
        %v1166 = vld [vmem:[%s304 + $0x1e8] sm:$0xff]
        %v1167 = vld [vmem:[%s304 + $0x1f0] sm:$0xff]
        %v1168 = vld [vmem:[%s304 + $0x1f8] sm:$0xff]
        %v1169 = vld [vmem:[%s304 + $0x200] sm:$0xff]
        %v1170 = vld [vmem:[%s304 + $0x208] sm:$0xff]
        %v1171 = vld [vmem:[%s304 + $0x210] sm:$0xff]
        %v1172 = vld [vmem:[%s304 + $0x218] sm:$0xff]
        %v1173 = vld [vmem:[%s304 + $0x220] sm:$0xff]
        %v1174 = vld [vmem:[%s304 + $0x228] sm:$0xff]
        %v1175 = vld [vmem:[%s304 + $0x230] sm:$0xff]
        %v1176 = vld [vmem:[%s304 + $0x238] sm:$0xff]
        %v1177 = vld [vmem:[%s304 + $0x240] sm:$0xff]
        %v1178 = vld [vmem:[%s304 + $0x248] sm:$0xff]
        %v1179 = vld [vmem:[%s304 + $0x250] sm:$0xff]
        %v1180 = vld [vmem:[%s304 + $0x258] sm:$0xff]
        %v1181 = vld [vmem:[%s304 + $0x260] sm:$0xff]
        %v1182 = vld [vmem:[%s304 + $0x268] sm:$0xff]
        %v1183 = vld [vmem:[%s304 + $0x270] sm:$0xff]
        %v1184 = vld [vmem:[%s304 + $0x278] sm:$0xff]
        %v1185 = vld [vmem:[%s304 + $0x280] sm:$0xff]
        %v1186 = vld [vmem:[%s304 + $0x288] sm:$0xff]
        %v1187 = vld [vmem:[%s304 + $0x290] sm:$0xff]
        %v1188 = vld [vmem:[%s304 + $0x298] sm:$0xff]
        %v1189 = vld [vmem:[%s304 + $0x2a0] sm:$0xff]
        %v1190 = vld [vmem:[%s304 + $0x2a8] sm:$0xff]
        %v1191 = vld [vmem:[%s304 + $0x2b0] sm:$0xff]
        %v1192 = vld [vmem:[%s304 + $0x2b8] sm:$0xff]
        %v1193 = vld [vmem:[%s304 + $0x2c0] sm:$0xff]
        %v1194 = vld [vmem:[%s304 + $0x2c8] sm:$0xff]
        %v1195 = vld [vmem:[%s304 + $0x2d0] sm:$0xff]
        %v1196 = vld [vmem:[%s304 + $0x2d8] sm:$0xff]
        %v1197 = vld [vmem:[%s304 + $0x2e0] sm:$0xff]
        %v1198 = vld [vmem:[%s304 + $0x2e8] sm:$0xff]
        %v1199 = vld [vmem:[%s304 + $0x2f0] sm:$0xff]
        %v1200 = vld [vmem:[%s304 + $0x2f8] sm:$0xff]
        %v1201 = vld [vmem:[%s304 + $0x300] sm:$0xff]
        %v1202 = vld [vmem:[%s304 + $0x308] sm:$0xff]
        %v1203 = vld [vmem:[%s304 + $0x310] sm:$0xff]
        %v1204 = vld [vmem:[%s304 + $0x318] sm:$0xff]
        %v1205 = vld [vmem:[%s304 + $0x320] sm:$0xff]
        %v1206 = vld [vmem:[%s304 + $0x328] sm:$0xff]
        %v1207 = vld [vmem:[%s304 + $0x330] sm:$0xff]
        %v1208 = vld [vmem:[%s304 + $0x338] sm:$0xff]
        %v1209 = vld [vmem:[%s304 + $0x340] sm:$0xff]
        %v1210 = vld [vmem:[%s304 + $0x348] sm:$0xff]
        %v1211 = vld [vmem:[%s304 + $0x350] sm:$0xff]
        %v1212 = vld [vmem:[%s304 + $0x358] sm:$0xff]
        %v1213 = vld [vmem:[%s304 + $0x360] sm:$0xff]
        %v1214 = vld [vmem:[%s304 + $0x368] sm:$0xff]
        %v1215 = vld [vmem:[%s304 + $0x370] sm:$0xff]
        %v1216 = vld [vmem:[%s304 + $0x378] sm:$0xff]
        %v1217 = vld [vmem:[%s304 + $0x380] sm:$0xff]
        %v1218 = vld [vmem:[%s304 + $0x388] sm:$0xff]
        %v1219 = vld [vmem:[%s304 + $0x390] sm:$0xff]
        %v1220 = vld [vmem:[%s304 + $0x398] sm:$0xff]
        %v1221 = vld [vmem:[%s304 + $0x3a0] sm:$0xff]
        %v1222 = vld [vmem:[%s304 + $0x3a8] sm:$0xff]
        %v1223 = vld [vmem:[%s304 + $0x3b0] sm:$0xff]
        %v1224 = vld [vmem:[%s304 + $0x3b8] sm:$0xff]
        %v1225 = vld [vmem:[%s304 + $0x3c0] sm:$0xff]
        %v1226 = vld [vmem:[%s304 + $0x3c8] sm:$0xff]
        %v1227 = vld [vmem:[%s304 + $0x3d0] sm:$0xff]
        %v1228 = vld [vmem:[%s304 + $0x3d8] sm:$0xff]
        %v1229 = vld [vmem:[%s304 + $0x3e0] sm:$0xff]
        %v1230 = vld [vmem:[%s304 + $0x3e8] sm:$0xff]
        %v1231 = vld [vmem:[%s304 + $0x3f0] sm:$0xff]
        %v1232 = vld [vmem:[%s304 + $0x3f8] sm:$0xff]
        %v1233 = vadd.f32 %v787, %v1105
        %v1234 = vadd.f32 %v789, %v1106
        %v1235 = vadd.f32 %v791, %v1107
        %v1236 = vadd.f32 %v793, %v1108
        %v1237 = vadd.f32 %v797, %v1109
        %v1238 = vadd.f32 %v799, %v1110
        %v1239 = vadd.f32 %v801, %v1111
        %v1240 = vadd.f32 %v803, %v1112
        %v1241 = vadd.f32 %v807, %v1113
        %v1242 = vadd.f32 %v809, %v1114
        %v1243 = vadd.f32 %v811, %v1115
        %v1244 = vadd.f32 %v813, %v1116
        %v1245 = vadd.f32 %v817, %v1117
        %v1246 = vadd.f32 %v819, %v1118
        %v1247 = vadd.f32 %v821, %v1119
        %v1248 = vadd.f32 %v823, %v1120
        %v1249 = vadd.f32 %v827, %v1121
        %v1250 = vadd.f32 %v829, %v1122
        %v1251 = vadd.f32 %v831, %v1123
        %v1252 = vadd.f32 %v833, %v1124
        %v1253 = vadd.f32 %v837, %v1125
        %v1254 = vadd.f32 %v839, %v1126
        %v1255 = vadd.f32 %v841, %v1127
        %v1256 = vadd.f32 %v843, %v1128
        %v1257 = vadd.f32 %v847, %v1129
        %v1258 = vadd.f32 %v849, %v1130
        %v1259 = vadd.f32 %v851, %v1131
        %v1260 = vadd.f32 %v853, %v1132
        %v1261 = vadd.f32 %v857, %v1133
        %v1262 = vadd.f32 %v859, %v1134
        %v1263 = vadd.f32 %v861, %v1135
        %v1264 = vadd.f32 %v863, %v1136
        %v1265 = vadd.f32 %v867, %v1137
        %v1266 = vadd.f32 %v869, %v1138
        %v1267 = vadd.f32 %v871, %v1139
        %v1268 = vadd.f32 %v873, %v1140
        %v1269 = vadd.f32 %v877, %v1141
        %v1270 = vadd.f32 %v879, %v1142
        %v1271 = vadd.f32 %v881, %v1143
        %v1272 = vadd.f32 %v883, %v1144
        %v1273 = vadd.f32 %v887, %v1145
        %v1274 = vadd.f32 %v889, %v1146
        %v1275 = vadd.f32 %v891, %v1147
        %v1276 = vadd.f32 %v893, %v1148
        %v1277 = vadd.f32 %v897, %v1149
        %v1278 = vadd.f32 %v899, %v1150
        %v1279 = vadd.f32 %v901, %v1151
        %v1280 = vadd.f32 %v903, %v1152
        %v1281 = vadd.f32 %v907, %v1153
        %v1282 = vadd.f32 %v909, %v1154
        %v1283 = vadd.f32 %v911, %v1155
        %v1284 = vadd.f32 %v913, %v1156
        %v1285 = vadd.f32 %v917, %v1157
        %v1286 = vadd.f32 %v919, %v1158
        %v1287 = vadd.f32 %v921, %v1159
        %v1288 = vadd.f32 %v923, %v1160
        %v1289 = vadd.f32 %v927, %v1161
        %v1290 = vadd.f32 %v929, %v1162
        %v1291 = vadd.f32 %v931, %v1163
        %v1292 = vadd.f32 %v933, %v1164
        %v1293 = vadd.f32 %v937, %v1165
        %v1294 = vadd.f32 %v939, %v1166
        %v1295 = vadd.f32 %v941, %v1167
        %v1296 = vadd.f32 %v943, %v1168
        %v1297 = vadd.f32 %v947, %v1169
        %v1298 = vadd.f32 %v949, %v1170
        %v1299 = vadd.f32 %v951, %v1171
        %v1300 = vadd.f32 %v953, %v1172
        %v1301 = vadd.f32 %v957, %v1173
        %v1302 = vadd.f32 %v959, %v1174
        %v1303 = vadd.f32 %v961, %v1175
        %v1304 = vadd.f32 %v963, %v1176
        %v1305 = vadd.f32 %v967, %v1177
        %v1306 = vadd.f32 %v969, %v1178
        %v1307 = vadd.f32 %v971, %v1179
        %v1308 = vadd.f32 %v973, %v1180
        %v1309 = vadd.f32 %v977, %v1181
        %v1310 = vadd.f32 %v979, %v1182
        %v1311 = vadd.f32 %v981, %v1183
        %v1312 = vadd.f32 %v983, %v1184
        %v1313 = vadd.f32 %v987, %v1185
        %v1314 = vadd.f32 %v989, %v1186
        %v1315 = vadd.f32 %v991, %v1187
        %v1316 = vadd.f32 %v993, %v1188
        %v1317 = vadd.f32 %v997, %v1189
        %v1318 = vadd.f32 %v999, %v1190
        %v1319 = vadd.f32 %v1001, %v1191
        %v1320 = vadd.f32 %v1003, %v1192
        %v1321 = vadd.f32 %v1007, %v1193
        %v1322 = vadd.f32 %v1009, %v1194
        %v1323 = vadd.f32 %v1011, %v1195
        %v1324 = vadd.f32 %v1013, %v1196
        %v1325 = vadd.f32 %v1017, %v1197
        %v1326 = vadd.f32 %v1019, %v1198
        %v1327 = vadd.f32 %v1021, %v1199
        %v1328 = vadd.f32 %v1023, %v1200
        %v1329 = vadd.f32 %v1027, %v1201
        %v1330 = vadd.f32 %v1029, %v1202
        %v1331 = vadd.f32 %v1031, %v1203
        %v1332 = vadd.f32 %v1033, %v1204
        %v1333 = vadd.f32 %v1037, %v1205
        %v1334 = vadd.f32 %v1039, %v1206
        %v1335 = vadd.f32 %v1041, %v1207
        %v1336 = vadd.f32 %v1043, %v1208
        %v1337 = vadd.f32 %v1047, %v1209
        %v1338 = vadd.f32 %v1049, %v1210
        %v1339 = vadd.f32 %v1051, %v1211
        %v1340 = vadd.f32 %v1053, %v1212
        %v1341 = vadd.f32 %v1057, %v1213
        %v1342 = vadd.f32 %v1059, %v1214
        %v1343 = vadd.f32 %v1061, %v1215
        %v1344 = vadd.f32 %v1063, %v1216
        %v1345 = vadd.f32 %v1067, %v1217
        %v1346 = vadd.f32 %v1069, %v1218
        %v1347 = vadd.f32 %v1071, %v1219
        %v1348 = vadd.f32 %v1073, %v1220
        %v1349 = vadd.f32 %v1077, %v1221
        %v1350 = vadd.f32 %v1079, %v1222
        %v1351 = vadd.f32 %v1081, %v1223
        %v1352 = vadd.f32 %v1083, %v1224
        %v1353 = vadd.f32 %v1087, %v1225
        %v1354 = vadd.f32 %v1089, %v1226
        %v1355 = vadd.f32 %v1091, %v1227
        %v1356 = vadd.f32 %v1093, %v1228
        %v1357 = vadd.f32 %v1097, %v1229
        %v1358 = vadd.f32 %v1099, %v1230
        %v1359 = vadd.f32 %v1101, %v1231
        %v1360 = vadd.f32 %v1103, %v1232
        %v1361 = vadd.f32 %v1233, %v1234
        %1362 = vadd.xlane.f32.xlu0 %v1361
        %v1363 = vpop.xlane.xlu0 %1362
        %v1364 = vadd.f32 %v1235, %v1236
        %1365 = vadd.xlane.f32.xlu0 %v1364
        %v1366 = vpop.xlane.xlu0 %1365
        %v1367 = vadd.f32 %v1237, %v1238
        %1368 = vadd.xlane.f32.xlu0 %v1367
        %v1369 = vpop.xlane.xlu0 %1368
        %v1370 = vadd.f32 %v1239, %v1240
        %1371 = vadd.xlane.f32.xlu0 %v1370
        %v1372 = vpop.xlane.xlu0 %1371
        %v1373 = vadd.f32 %v1241, %v1242
        %1374 = vadd.xlane.f32.xlu0 %v1373
        %v1375 = vpop.xlane.xlu0 %1374
        %v1376 = vadd.f32 %v1243, %v1244
        %1377 = vadd.xlane.f32.xlu0 %v1376
        %v1378 = vpop.xlane.xlu0 %1377
        %v1379 = vadd.f32 %v1245, %v1246
        %1380 = vadd.xlane.f32.xlu0 %v1379
        %v1381 = vpop.xlane.xlu0 %1380
        %v1382 = vadd.f32 %v1247, %v1248
        %1383 = vadd.xlane.f32.xlu0 %v1382
        %v1384 = vpop.xlane.xlu0 %1383
        %v1385 = vadd.f32 %v1249, %v1250
        %1386 = vadd.xlane.f32.xlu0 %v1385
        %v1387 = vpop.xlane.xlu0 %1386
        %v1388 = vadd.f32 %v1251, %v1252
        %1389 = vadd.xlane.f32.xlu0 %v1388
        %v1390 = vpop.xlane.xlu0 %1389
        %v1391 = vadd.f32 %v1253, %v1254
        %1392 = vadd.xlane.f32.xlu0 %v1391
        %v1393 = vpop.xlane.xlu0 %1392
        %v1394 = vadd.f32 %v1255, %v1256
        %1395 = vadd.xlane.f32.xlu0 %v1394
        %v1396 = vpop.xlane.xlu0 %1395
        %v1397 = vadd.f32 %v1257, %v1258
        %1398 = vadd.xlane.f32.xlu0 %v1397
        %v1399 = vpop.xlane.xlu0 %1398
        %v1400 = vadd.f32 %v1259, %v1260
        %1401 = vadd.xlane.f32.xlu0 %v1400
        %v1402 = vpop.xlane.xlu0 %1401
        %v1403 = vadd.f32 %v1261, %v1262
        %1404 = vadd.xlane.f32.xlu0 %v1403
        %v1405 = vpop.xlane.xlu0 %1404
        %v1406 = vadd.f32 %v1263, %v1264
        %1407 = vadd.xlane.f32.xlu0 %v1406
        %v1408 = vpop.xlane.xlu0 %1407
        %v1409 = vadd.f32 %v1265, %v1266
        %1410 = vadd.xlane.f32.xlu0 %v1409
        %v1411 = vpop.xlane.xlu0 %1410
        %v1412 = vadd.f32 %v1267, %v1268
        %1413 = vadd.xlane.f32.xlu0 %v1412
        %v1414 = vpop.xlane.xlu0 %1413
        %v1415 = vadd.f32 %v1269, %v1270
        %1416 = vadd.xlane.f32.xlu0 %v1415
        %v1417 = vpop.xlane.xlu0 %1416
        %v1418 = vadd.f32 %v1271, %v1272
        %1419 = vadd.xlane.f32.xlu0 %v1418
        %v1420 = vpop.xlane.xlu0 %1419
        %v1421 = vadd.f32 %v1273, %v1274
        %1422 = vadd.xlane.f32.xlu0 %v1421
        %v1423 = vpop.xlane.xlu0 %1422
        %v1424 = vadd.f32 %v1275, %v1276
        %1425 = vadd.xlane.f32.xlu0 %v1424
        %v1426 = vpop.xlane.xlu0 %1425
        %v1427 = vadd.f32 %v1277, %v1278
        %1428 = vadd.xlane.f32.xlu0 %v1427
        %v1429 = vpop.xlane.xlu0 %1428
        %v1430 = vadd.f32 %v1279, %v1280
        %1431 = vadd.xlane.f32.xlu0 %v1430
        %v1432 = vpop.xlane.xlu0 %1431
        %v1433 = vadd.f32 %v1281, %v1282
        %1434 = vadd.xlane.f32.xlu0 %v1433
        %v1435 = vpop.xlane.xlu0 %1434
        %v1436 = vadd.f32 %v1283, %v1284
        %1437 = vadd.xlane.f32.xlu0 %v1436
        %v1438 = vpop.xlane.xlu0 %1437
        %v1439 = vadd.f32 %v1285, %v1286
        %1440 = vadd.xlane.f32.xlu0 %v1439
        %v1441 = vpop.xlane.xlu0 %1440
        %v1442 = vadd.f32 %v1287, %v1288
        %1443 = vadd.xlane.f32.xlu0 %v1442
        %v1444 = vpop.xlane.xlu0 %1443
        %v1445 = vadd.f32 %v1289, %v1290
        %1446 = vadd.xlane.f32.xlu0 %v1445
        %v1447 = vpop.xlane.xlu0 %1446
        %v1448 = vadd.f32 %v1291, %v1292
        %1449 = vadd.xlane.f32.xlu0 %v1448
        %v1450 = vpop.xlane.xlu0 %1449
        %v1451 = vadd.f32 %v1293, %v1294
        %1452 = vadd.xlane.f32.xlu0 %v1451
        %v1453 = vpop.xlane.xlu0 %1452
        %v1454 = vadd.f32 %v1295, %v1296
        %1455 = vadd.xlane.f32.xlu0 %v1454
        %v1456 = vpop.xlane.xlu0 %1455
        %v1457 = vadd.f32 %v1297, %v1298
        %1458 = vadd.xlane.f32.xlu0 %v1457
        %v1459 = vpop.xlane.xlu0 %1458
        %v1460 = vadd.f32 %v1299, %v1300
        %1461 = vadd.xlane.f32.xlu0 %v1460
        %v1462 = vpop.xlane.xlu0 %1461
        %v1463 = vadd.f32 %v1301, %v1302
        %1464 = vadd.xlane.f32.xlu0 %v1463
        %v1465 = vpop.xlane.xlu0 %1464
        %v1466 = vadd.f32 %v1303, %v1304
        %1467 = vadd.xlane.f32.xlu0 %v1466
        %v1468 = vpop.xlane.xlu0 %1467
        %v1469 = vadd.f32 %v1305, %v1306
        %1470 = vadd.xlane.f32.xlu0 %v1469
        %v1471 = vpop.xlane.xlu0 %1470
        %v1472 = vadd.f32 %v1307, %v1308
        %1473 = vadd.xlane.f32.xlu0 %v1472
        %v1474 = vpop.xlane.xlu0 %1473
        %v1475 = vadd.f32 %v1309, %v1310
        %1476 = vadd.xlane.f32.xlu0 %v1475
        %v1477 = vpop.xlane.xlu0 %1476
        %v1478 = vadd.f32 %v1311, %v1312
        %1479 = vadd.xlane.f32.xlu0 %v1478
        %v1480 = vpop.xlane.xlu0 %1479
        %v1481 = vadd.f32 %v1313, %v1314
        %1482 = vadd.xlane.f32.xlu0 %v1481
        %v1483 = vpop.xlane.xlu0 %1482
        %v1484 = vadd.f32 %v1315, %v1316
        %1485 = vadd.xlane.f32.xlu0 %v1484
        %v1486 = vpop.xlane.xlu0 %1485
        %v1487 = vadd.f32 %v1317, %v1318
        %1488 = vadd.xlane.f32.xlu0 %v1487
        %v1489 = vpop.xlane.xlu0 %1488
        %v1490 = vadd.f32 %v1319, %v1320
        %1491 = vadd.xlane.f32.xlu0 %v1490
        %v1492 = vpop.xlane.xlu0 %1491
        %v1493 = vadd.f32 %v1321, %v1322
        %1494 = vadd.xlane.f32.xlu0 %v1493
        %v1495 = vpop.xlane.xlu0 %1494
        %v1496 = vadd.f32 %v1323, %v1324
        %1497 = vadd.xlane.f32.xlu0 %v1496
        %v1498 = vpop.xlane.xlu0 %1497
        %v1499 = vadd.f32 %v1325, %v1326
        %1500 = vadd.xlane.f32.xlu0 %v1499
        %v1501 = vpop.xlane.xlu0 %1500
        %v1502 = vadd.f32 %v1327, %v1328
        %1503 = vadd.xlane.f32.xlu0 %v1502
        %v1504 = vpop.xlane.xlu0 %1503
        %v1505 = vadd.f32 %v1329, %v1330
        %1506 = vadd.xlane.f32.xlu0 %v1505
        %v1507 = vpop.xlane.xlu0 %1506
        %v1508 = vadd.f32 %v1331, %v1332
        %1509 = vadd.xlane.f32.xlu0 %v1508
        %v1510 = vpop.xlane.xlu0 %1509
        %v1511 = vadd.f32 %v1333, %v1334
        %1512 = vadd.xlane.f32.xlu0 %v1511
        %v1513 = vpop.xlane.xlu0 %1512
        %v1514 = vadd.f32 %v1335, %v1336
        %1515 = vadd.xlane.f32.xlu0 %v1514
        %v1516 = vpop.xlane.xlu0 %1515
        %v1517 = vadd.f32 %v1337, %v1338
        %1518 = vadd.xlane.f32.xlu0 %v1517
        %v1519 = vpop.xlane.xlu0 %1518
        %v1520 = vadd.f32 %v1339, %v1340
        %1521 = vadd.xlane.f32.xlu0 %v1520
        %v1522 = vpop.xlane.xlu0 %1521
        %v1523 = vadd.f32 %v1341, %v1342
        %1524 = vadd.xlane.f32.xlu0 %v1523
        %v1525 = vpop.xlane.xlu0 %1524
        %v1526 = vadd.f32 %v1343, %v1344
        %1527 = vadd.xlane.f32.xlu0 %v1526
        %v1528 = vpop.xlane.xlu0 %1527
        %v1529 = vadd.f32 %v1345, %v1346
        %1530 = vadd.xlane.f32.xlu0 %v1529
        %v1531 = vpop.xlane.xlu0 %1530
        %v1532 = vadd.f32 %v1347, %v1348
        %1533 = vadd.xlane.f32.xlu0 %v1532
        %v1534 = vpop.xlane.xlu0 %1533
        %v1535 = vadd.f32 %v1349, %v1350
        %1536 = vadd.xlane.f32.xlu0 %v1535
        %v1537 = vpop.xlane.xlu0 %1536
        %v1538 = vadd.f32 %v1351, %v1352
        %1539 = vadd.xlane.f32.xlu0 %v1538
        %v1540 = vpop.xlane.xlu0 %1539
        %v1541 = vadd.f32 %v1353, %v1354
        %1542 = vadd.xlane.f32.xlu0 %v1541
        %v1543 = vpop.xlane.xlu0 %1542
        %v1544 = vadd.f32 %v1355, %v1356
        %1545 = vadd.xlane.f32.xlu0 %v1544
        %v1546 = vpop.xlane.xlu0 %1545
        %v1547 = vadd.f32 %v1357, %v1358
        %1548 = vadd.xlane.f32.xlu0 %v1547
        %v1549 = vpop.xlane.xlu0 %1548
        %v1550 = vadd.f32 %v1359, %v1360
        %1551 = vadd.xlane.f32.xlu0 %v1550
        %v1552 = vpop.xlane.xlu0 %1551
        %v1553 = vrcp.pop 256.0
        %v1554 = vmul.f32 %v1363, %v1553
        %v1555 = vmul.f32 %v1366, %v1553
        %v1556 = vmul.f32 %v1369, %v1553
        %v1557 = vmul.f32 %v1372, %v1553
        %v1558 = vmul.f32 %v1375, %v1553
        %v1559 = vmul.f32 %v1378, %v1553
        %v1560 = vmul.f32 %v1381, %v1553
        %v1561 = vmul.f32 %v1384, %v1553
        %v1562 = vmul.f32 %v1387, %v1553
        %v1563 = vmul.f32 %v1390, %v1553
        %v1564 = vmul.f32 %v1393, %v1553
        %v1565 = vmul.f32 %v1396, %v1553
        %v1566 = vmul.f32 %v1399, %v1553
        %v1567 = vmul.f32 %v1402, %v1553
        %v1568 = vmul.f32 %v1405, %v1553
        %v1569 = vmul.f32 %v1408, %v1553
        %v1570 = vmul.f32 %v1411, %v1553
        %v1571 = vmul.f32 %v1414, %v1553
        %v1572 = vmul.f32 %v1417, %v1553
        %v1573 = vmul.f32 %v1420, %v1553
        %v1574 = vmul.f32 %v1423, %v1553
        %v1575 = vmul.f32 %v1426, %v1553
        %v1576 = vmul.f32 %v1429, %v1553
        %v1577 = vmul.f32 %v1432, %v1553
        %v1578 = vmul.f32 %v1435, %v1553
        %v1579 = vmul.f32 %v1438, %v1553
        %v1580 = vmul.f32 %v1441, %v1553
        %v1581 = vmul.f32 %v1444, %v1553
        %v1582 = vmul.f32 %v1447, %v1553
        %v1583 = vmul.f32 %v1450, %v1553
        %v1584 = vmul.f32 %v1453, %v1553
        %v1585 = vmul.f32 %v1456, %v1553
        %v1586 = vmul.f32 %v1459, %v1553
        %v1587 = vmul.f32 %v1462, %v1553
        %v1588 = vmul.f32 %v1465, %v1553
        %v1589 = vmul.f32 %v1468, %v1553
        %v1590 = vmul.f32 %v1471, %v1553
        %v1591 = vmul.f32 %v1474, %v1553
        %v1592 = vmul.f32 %v1477, %v1553
        %v1593 = vmul.f32 %v1480, %v1553
        %v1594 = vmul.f32 %v1483, %v1553
        %v1595 = vmul.f32 %v1486, %v1553
        %v1596 = vmul.f32 %v1489, %v1553
        %v1597 = vmul.f32 %v1492, %v1553
        %v1598 = vmul.f32 %v1495, %v1553
        %v1599 = vmul.f32 %v1498, %v1553
        %v1600 = vmul.f32 %v1501, %v1553
        %v1601 = vmul.f32 %v1504, %v1553
        %v1602 = vmul.f32 %v1507, %v1553
        %v1603 = vmul.f32 %v1510, %v1553
        %v1604 = vmul.f32 %v1513, %v1553
        %v1605 = vmul.f32 %v1516, %v1553
        %v1606 = vmul.f32 %v1519, %v1553
        %v1607 = vmul.f32 %v1522, %v1553
        %v1608 = vmul.f32 %v1525, %v1553
        %v1609 = vmul.f32 %v1528, %v1553
        %v1610 = vmul.f32 %v1531, %v1553
        %v1611 = vmul.f32 %v1534, %v1553
        %v1612 = vmul.f32 %v1537, %v1553
        %v1613 = vmul.f32 %v1540, %v1553
        %v1614 = vmul.f32 %v1543, %v1553
        %v1615 = vmul.f32 %v1546, %v1553
        %v1616 = vmul.f32 %v1549, %v1553
        %v1617 = vmul.f32 %v1552, %v1553
        %v1618 = vmul.f32 %v1233, %v1233
        %v1619 = vmul.f32 %v1234, %v1234
        %v1620 = vmul.f32 %v1235, %v1235
        %v1621 = vmul.f32 %v1236, %v1236
        %v1622 = vmul.f32 %v1237, %v1237
        %v1623 = vmul.f32 %v1238, %v1238
        %v1624 = vmul.f32 %v1239, %v1239
        %v1625 = vmul.f32 %v1240, %v1240
        %v1626 = vmul.f32 %v1241, %v1241
        %v1627 = vmul.f32 %v1242, %v1242
        %v1628 = vmul.f32 %v1243, %v1243
        %v1629 = vmul.f32 %v1244, %v1244
        %v1630 = vmul.f32 %v1245, %v1245
        %v1631 = vmul.f32 %v1246, %v1246
        %v1632 = vmul.f32 %v1247, %v1247
        %v1633 = vmul.f32 %v1248, %v1248
        %v1634 = vmul.f32 %v1249, %v1249
        %v1635 = vmul.f32 %v1250, %v1250
        %v1636 = vmul.f32 %v1251, %v1251
        %v1637 = vmul.f32 %v1252, %v1252
        %v1638 = vmul.f32 %v1253, %v1253
        %v1639 = vmul.f32 %v1254, %v1254
        %v1640 = vmul.f32 %v1255, %v1255
        %v1641 = vmul.f32 %v1256, %v1256
        %v1642 = vmul.f32 %v1257, %v1257
        %v1643 = vmul.f32 %v1258, %v1258
        %v1644 = vmul.f32 %v1259, %v1259
        %v1645 = vmul.f32 %v1260, %v1260
        %v1646 = vmul.f32 %v1261, %v1261
        %v1647 = vmul.f32 %v1262, %v1262
        %v1648 = vmul.f32 %v1263, %v1263
        %v1649 = vmul.f32 %v1264, %v1264
        %v1650 = vmul.f32 %v1265, %v1265
        %v1651 = vmul.f32 %v1266, %v1266
        %v1652 = vmul.f32 %v1267, %v1267
        %v1653 = vmul.f32 %v1268, %v1268
        %v1654 = vmul.f32 %v1269, %v1269
        %v1655 = vmul.f32 %v1270, %v1270
        %v1656 = vmul.f32 %v1271, %v1271
        %v1657 = vmul.f32 %v1272, %v1272
        %v1658 = vmul.f32 %v1273, %v1273
        %v1659 = vmul.f32 %v1274, %v1274
        %v1660 = vmul.f32 %v1275, %v1275
        %v1661 = vmul.f32 %v1276, %v1276
        %v1662 = vmul.f32 %v1277, %v1277
        %v1663 = vmul.f32 %v1278, %v1278
        %v1664 = vmul.f32 %v1279, %v1279
        %v1665 = vmul.f32 %v1280, %v1280
        %v1666 = vmul.f32 %v1281, %v1281
        %v1667 = vmul.f32 %v1282, %v1282
        %v1668 = vmul.f32 %v1283, %v1283
        %v1669 = vmul.f32 %v1284, %v1284
        %v1670 = vmul.f32 %v1285, %v1285
        %v1671 = vmul.f32 %v1286, %v1286
        %v1672 = vmul.f32 %v1287, %v1287
        %v1673 = vmul.f32 %v1288, %v1288
        %v1674 = vmul.f32 %v1289, %v1289
        %v1675 = vmul.f32 %v1290, %v1290
        %v1676 = vmul.f32 %v1291, %v1291
        %v1677 = vmul.f32 %v1292, %v1292
        %v1678 = vmul.f32 %v1293, %v1293
        %v1679 = vmul.f32 %v1294, %v1294
        %v1680 = vmul.f32 %v1295, %v1295
        %v1681 = vmul.f32 %v1296, %v1296
        %v1682 = vmul.f32 %v1297, %v1297
        %v1683 = vmul.f32 %v1298, %v1298
        %v1684 = vmul.f32 %v1299, %v1299
        %v1685 = vmul.f32 %v1300, %v1300
        %v1686 = vmul.f32 %v1301, %v1301
        %v1687 = vmul.f32 %v1302, %v1302
        %v1688 = vmul.f32 %v1303, %v1303
        %v1689 = vmul.f32 %v1304, %v1304
        %v1690 = vmul.f32 %v1305, %v1305
        %v1691 = vmul.f32 %v1306, %v1306
        %v1692 = vmul.f32 %v1307, %v1307
        %v1693 = vmul.f32 %v1308, %v1308
        %v1694 = vmul.f32 %v1309, %v1309
        %v1695 = vmul.f32 %v1310, %v1310
        %v1696 = vmul.f32 %v1311, %v1311
        %v1697 = vmul.f32 %v1312, %v1312
        %v1698 = vmul.f32 %v1313, %v1313
        %v1699 = vmul.f32 %v1314, %v1314
        %v1700 = vmul.f32 %v1315, %v1315
        %v1701 = vmul.f32 %v1316, %v1316
        %v1702 = vmul.f32 %v1317, %v1317
        %v1703 = vmul.f32 %v1318, %v1318
        %v1704 = vmul.f32 %v1319, %v1319
        %v1705 = vmul.f32 %v1320, %v1320
        %v1706 = vmul.f32 %v1321, %v1321
        %v1707 = vmul.f32 %v1322, %v1322
        %v1708 = vmul.f32 %v1323, %v1323
        %v1709 = vmul.f32 %v1324, %v1324
        %v1710 = vmul.f32 %v1325, %v1325
        %v1711 = vmul.f32 %v1326, %v1326
        %v1712 = vmul.f32 %v1327, %v1327
        %v1713 = vmul.f32 %v1328, %v1328
        %v1714 = vmul.f32 %v1329, %v1329
        %v1715 = vmul.f32 %v1330, %v1330
        %v1716 = vmul.f32 %v1331, %v1331
        %v1717 = vmul.f32 %v1332, %v1332
        %v1718 = vmul.f32 %v1333, %v1333
        %v1719 = vmul.f32 %v1334, %v1334
        %v1720 = vmul.f32 %v1335, %v1335
        %v1721 = vmul.f32 %v1336, %v1336
        %v1722 = vmul.f32 %v1337, %v1337
        %v1723 = vmul.f32 %v1338, %v1338
        %v1724 = vmul.f32 %v1339, %v1339
        %v1725 = vmul.f32 %v1340, %v1340
        %v1726 = vmul.f32 %v1341, %v1341
        %v1727 = vmul.f32 %v1342, %v1342
        %v1728 = vmul.f32 %v1343, %v1343
        %v1729 = vmul.f32 %v1344, %v1344
        %v1730 = vmul.f32 %v1345, %v1345
        %v1731 = vmul.f32 %v1346, %v1346
        %v1732 = vmul.f32 %v1347, %v1347
        %v1733 = vmul.f32 %v1348, %v1348
        %v1734 = vmul.f32 %v1349, %v1349
        %v1735 = vmul.f32 %v1350, %v1350
        %v1736 = vmul.f32 %v1351, %v1351
        %v1737 = vmul.f32 %v1352, %v1352
        %v1738 = vmul.f32 %v1353, %v1353
        %v1739 = vmul.f32 %v1354, %v1354
        %v1740 = vmul.f32 %v1355, %v1355
        %v1741 = vmul.f32 %v1356, %v1356
        %v1742 = vmul.f32 %v1357, %v1357
        %v1743 = vmul.f32 %v1358, %v1358
        %v1744 = vmul.f32 %v1359, %v1359
        %v1745 = vmul.f32 %v1360, %v1360
        %v1746 = vadd.f32 %v1618, %v1619
        %1747 = vadd.xlane.f32.xlu0 %v1746
        %v1748 = vpop.xlane.xlu0 %1747
        %v1749 = vadd.f32 %v1620, %v1621
        %1750 = vadd.xlane.f32.xlu0 %v1749
        %v1751 = vpop.xlane.xlu0 %1750
        %v1752 = vadd.f32 %v1622, %v1623
        %1753 = vadd.xlane.f32.xlu0 %v1752
        %v1754 = vpop.xlane.xlu0 %1753
        %v1755 = vadd.f32 %v1624, %v1625
        %1756 = vadd.xlane.f32.xlu0 %v1755
        %v1757 = vpop.xlane.xlu0 %1756
        %v1758 = vadd.f32 %v1626, %v1627
        %1759 = vadd.xlane.f32.xlu0 %v1758
        %v1760 = vpop.xlane.xlu0 %1759
        %v1761 = vadd.f32 %v1628, %v1629
        %1762 = vadd.xlane.f32.xlu0 %v1761
        %v1763 = vpop.xlane.xlu0 %1762
        %v1764 = vadd.f32 %v1630, %v1631
        %1765 = vadd.xlane.f32.xlu0 %v1764
        %v1766 = vpop.xlane.xlu0 %1765
        %v1767 = vadd.f32 %v1632, %v1633
        %1768 = vadd.xlane.f32.xlu0 %v1767
        %v1769 = vpop.xlane.xlu0 %1768
        %v1770 = vadd.f32 %v1634, %v1635
        %1771 = vadd.xlane.f32.xlu0 %v1770
        %v1772 = vpop.xlane.xlu0 %1771
        %v1773 = vadd.f32 %v1636, %v1637
        %1774 = vadd.xlane.f32.xlu0 %v1773
        %v1775 = vpop.xlane.xlu0 %1774
        %v1776 = vadd.f32 %v1638, %v1639
        %1777 = vadd.xlane.f32.xlu0 %v1776
        %v1778 = vpop.xlane.xlu0 %1777
        %v1779 = vadd.f32 %v1640, %v1641
        %1780 = vadd.xlane.f32.xlu0 %v1779
        %v1781 = vpop.xlane.xlu0 %1780
        %v1782 = vadd.f32 %v1642, %v1643
        %1783 = vadd.xlane.f32.xlu0 %v1782
        %v1784 = vpop.xlane.xlu0 %1783
        %v1785 = vadd.f32 %v1644, %v1645
        %1786 = vadd.xlane.f32.xlu0 %v1785
        %v1787 = vpop.xlane.xlu0 %1786
        %v1788 = vadd.f32 %v1646, %v1647
        %1789 = vadd.xlane.f32.xlu0 %v1788
        %v1790 = vpop.xlane.xlu0 %1789
        %v1791 = vadd.f32 %v1648, %v1649
        %1792 = vadd.xlane.f32.xlu0 %v1791
        %v1793 = vpop.xlane.xlu0 %1792
        %v1794 = vadd.f32 %v1650, %v1651
        %1795 = vadd.xlane.f32.xlu0 %v1794
        %v1796 = vpop.xlane.xlu0 %1795
        %v1797 = vadd.f32 %v1652, %v1653
        %1798 = vadd.xlane.f32.xlu0 %v1797
        %v1799 = vpop.xlane.xlu0 %1798
        %v1800 = vadd.f32 %v1654, %v1655
        %1801 = vadd.xlane.f32.xlu0 %v1800
        %v1802 = vpop.xlane.xlu0 %1801
        %v1803 = vadd.f32 %v1656, %v1657
        %1804 = vadd.xlane.f32.xlu0 %v1803
        %v1805 = vpop.xlane.xlu0 %1804
        %v1806 = vadd.f32 %v1658, %v1659
        %1807 = vadd.xlane.f32.xlu0 %v1806
        %v1808 = vpop.xlane.xlu0 %1807
        %v1809 = vadd.f32 %v1660, %v1661
        %1810 = vadd.xlane.f32.xlu0 %v1809
        %v1811 = vpop.xlane.xlu0 %1810
        %v1812 = vadd.f32 %v1662, %v1663
        %1813 = vadd.xlane.f32.xlu0 %v1812
        %v1814 = vpop.xlane.xlu0 %1813
        %v1815 = vadd.f32 %v1664, %v1665
        %1816 = vadd.xlane.f32.xlu0 %v1815
        %v1817 = vpop.xlane.xlu0 %1816
        %v1818 = vadd.f32 %v1666, %v1667
        %1819 = vadd.xlane.f32.xlu0 %v1818
        %v1820 = vpop.xlane.xlu0 %1819
        %v1821 = vadd.f32 %v1668, %v1669
        %1822 = vadd.xlane.f32.xlu0 %v1821
        %v1823 = vpop.xlane.xlu0 %1822
        %v1824 = vadd.f32 %v1670, %v1671
        %1825 = vadd.xlane.f32.xlu0 %v1824
        %v1826 = vpop.xlane.xlu0 %1825
        %v1827 = vadd.f32 %v1672, %v1673
        %1828 = vadd.xlane.f32.xlu0 %v1827
        %v1829 = vpop.xlane.xlu0 %1828
        %v1830 = vadd.f32 %v1674, %v1675
        %1831 = vadd.xlane.f32.xlu0 %v1830
        %v1832 = vpop.xlane.xlu0 %1831
        %v1833 = vadd.f32 %v1676, %v1677
        %1834 = vadd.xlane.f32.xlu0 %v1833
        %v1835 = vpop.xlane.xlu0 %1834
        %v1836 = vadd.f32 %v1678, %v1679
        %1837 = vadd.xlane.f32.xlu0 %v1836
        %v1838 = vpop.xlane.xlu0 %1837
        %v1839 = vadd.f32 %v1680, %v1681
        %1840 = vadd.xlane.f32.xlu0 %v1839
        %v1841 = vpop.xlane.xlu0 %1840
        %v1842 = vadd.f32 %v1682, %v1683
        %1843 = vadd.xlane.f32.xlu0 %v1842
        %v1844 = vpop.xlane.xlu0 %1843
        %v1845 = vadd.f32 %v1684, %v1685
        %1846 = vadd.xlane.f32.xlu0 %v1845
        %v1847 = vpop.xlane.xlu0 %1846
        %v1848 = vadd.f32 %v1686, %v1687
        %1849 = vadd.xlane.f32.xlu0 %v1848
        %v1850 = vpop.xlane.xlu0 %1849
        %v1851 = vadd.f32 %v1688, %v1689
        %1852 = vadd.xlane.f32.xlu0 %v1851
        %v1853 = vpop.xlane.xlu0 %1852
        %v1854 = vadd.f32 %v1690, %v1691
        %1855 = vadd.xlane.f32.xlu0 %v1854
        %v1856 = vpop.xlane.xlu0 %1855
        %v1857 = vadd.f32 %v1692, %v1693
        %1858 = vadd.xlane.f32.xlu0 %v1857
        %v1859 = vpop.xlane.xlu0 %1858
        %v1860 = vadd.f32 %v1694, %v1695
        %1861 = vadd.xlane.f32.xlu0 %v1860
        %v1862 = vpop.xlane.xlu0 %1861
        %v1863 = vadd.f32 %v1696, %v1697
        %1864 = vadd.xlane.f32.xlu0 %v1863
        %v1865 = vpop.xlane.xlu0 %1864
        %v1866 = vadd.f32 %v1698, %v1699
        %1867 = vadd.xlane.f32.xlu0 %v1866
        %v1868 = vpop.xlane.xlu0 %1867
        %v1869 = vadd.f32 %v1700, %v1701
        %1870 = vadd.xlane.f32.xlu0 %v1869
        %v1871 = vpop.xlane.xlu0 %1870
        %v1872 = vadd.f32 %v1702, %v1703
        %1873 = vadd.xlane.f32.xlu0 %v1872
        %v1874 = vpop.xlane.xlu0 %1873
        %v1875 = vadd.f32 %v1704, %v1705
        %1876 = vadd.xlane.f32.xlu0 %v1875
        %v1877 = vpop.xlane.xlu0 %1876
        %v1878 = vadd.f32 %v1706, %v1707
        %1879 = vadd.xlane.f32.xlu0 %v1878
        %v1880 = vpop.xlane.xlu0 %1879
        %v1881 = vadd.f32 %v1708, %v1709
        %1882 = vadd.xlane.f32.xlu0 %v1881
        %v1883 = vpop.xlane.xlu0 %1882
        %v1884 = vadd.f32 %v1710, %v1711
        %1885 = vadd.xlane.f32.xlu0 %v1884
        %v1886 = vpop.xlane.xlu0 %1885
        %v1887 = vadd.f32 %v1712, %v1713
        %1888 = vadd.xlane.f32.xlu0 %v1887
        %v1889 = vpop.xlane.xlu0 %1888
        %v1890 = vadd.f32 %v1714, %v1715
        %1891 = vadd.xlane.f32.xlu0 %v1890
        %v1892 = vpop.xlane.xlu0 %1891
        %v1893 = vadd.f32 %v1716, %v1717
        %1894 = vadd.xlane.f32.xlu0 %v1893
        %v1895 = vpop.xlane.xlu0 %1894
        %v1896 = vadd.f32 %v1718, %v1719
        %1897 = vadd.xlane.f32.xlu0 %v1896
        %v1898 = vpop.xlane.xlu0 %1897
        %v1899 = vadd.f32 %v1720, %v1721
        %1900 = vadd.xlane.f32.xlu0 %v1899
        %v1901 = vpop.xlane.xlu0 %1900
        %v1902 = vadd.f32 %v1722, %v1723
        %1903 = vadd.xlane.f32.xlu0 %v1902
        %v1904 = vpop.xlane.xlu0 %1903
        %v1905 = vadd.f32 %v1724, %v1725
        %1906 = vadd.xlane.f32.xlu0 %v1905
        %v1907 = vpop.xlane.xlu0 %1906
        %v1908 = vadd.f32 %v1726, %v1727
        %1909 = vadd.xlane.f32.xlu0 %v1908
        %v1910 = vpop.xlane.xlu0 %1909
        %v1911 = vadd.f32 %v1728, %v1729
        %1912 = vadd.xlane.f32.xlu0 %v1911
        %v1913 = vpop.xlane.xlu0 %1912
        %v1914 = vadd.f32 %v1730, %v1731
        %1915 = vadd.xlane.f32.xlu0 %v1914
        %v1916 = vpop.xlane.xlu0 %1915
        %v1917 = vadd.f32 %v1732, %v1733
        %1918 = vadd.xlane.f32.xlu0 %v1917
        %v1919 = vpop.xlane.xlu0 %1918
        %v1920 = vadd.f32 %v1734, %v1735
        %1921 = vadd.xlane.f32.xlu0 %v1920
        %v1922 = vpop.xlane.xlu0 %1921
        %v1923 = vadd.f32 %v1736, %v1737
        %1924 = vadd.xlane.f32.xlu0 %v1923
        %v1925 = vpop.xlane.xlu0 %1924
        %v1926 = vadd.f32 %v1738, %v1739
        %1927 = vadd.xlane.f32.xlu0 %v1926
        %v1928 = vpop.xlane.xlu0 %1927
        %v1929 = vadd.f32 %v1740, %v1741
        %1930 = vadd.xlane.f32.xlu0 %v1929
        %v1931 = vpop.xlane.xlu0 %1930
        %v1932 = vadd.f32 %v1742, %v1743
        %1933 = vadd.xlane.f32.xlu0 %v1932
        %v1934 = vpop.xlane.xlu0 %1933
        %v1935 = vadd.f32 %v1744, %v1745
        %1936 = vadd.xlane.f32.xlu0 %v1935
        %v1937 = vpop.xlane.xlu0 %1936
        %v1938 = vmul.f32 %v1748, %v1553
        %v1939 = vmul.f32 %v1751, %v1553
        %v1940 = vmul.f32 %v1754, %v1553
        %v1941 = vmul.f32 %v1757, %v1553
        %v1942 = vmul.f32 %v1760, %v1553
        %v1943 = vmul.f32 %v1763, %v1553
        %v1944 = vmul.f32 %v1766, %v1553
        %v1945 = vmul.f32 %v1769, %v1553
        %v1946 = vmul.f32 %v1772, %v1553
        %v1947 = vmul.f32 %v1775, %v1553
        %v1948 = vmul.f32 %v1778, %v1553
        %v1949 = vmul.f32 %v1781, %v1553
        %v1950 = vmul.f32 %v1784, %v1553
        %v1951 = vmul.f32 %v1787, %v1553
        %v1952 = vmul.f32 %v1790, %v1553
        %v1953 = vmul.f32 %v1793, %v1553
        %v1954 = vmul.f32 %v1796, %v1553
        %v1955 = vmul.f32 %v1799, %v1553
        %v1956 = vmul.f32 %v1802, %v1553
        %v1957 = vmul.f32 %v1805, %v1553
        %v1958 = vmul.f32 %v1808, %v1553
        %v1959 = vmul.f32 %v1811, %v1553
        %v1960 = vmul.f32 %v1814, %v1553
        %v1961 = vmul.f32 %v1817, %v1553
        %v1962 = vmul.f32 %v1820, %v1553
        %v1963 = vmul.f32 %v1823, %v1553
        %v1964 = vmul.f32 %v1826, %v1553
        %v1965 = vmul.f32 %v1829, %v1553
        %v1966 = vmul.f32 %v1832, %v1553
        %v1967 = vmul.f32 %v1835, %v1553
        %v1968 = vmul.f32 %v1838, %v1553
        %v1969 = vmul.f32 %v1841, %v1553
        %v1970 = vmul.f32 %v1844, %v1553
        %v1971 = vmul.f32 %v1847, %v1553
        %v1972 = vmul.f32 %v1850, %v1553
        %v1973 = vmul.f32 %v1853, %v1553
        %v1974 = vmul.f32 %v1856, %v1553
        %v1975 = vmul.f32 %v1859, %v1553
        %v1976 = vmul.f32 %v1862, %v1553
        %v1977 = vmul.f32 %v1865, %v1553
        %v1978 = vmul.f32 %v1868, %v1553
        %v1979 = vmul.f32 %v1871, %v1553
        %v1980 = vmul.f32 %v1874, %v1553
        %v1981 = vmul.f32 %v1877, %v1553
        %v1982 = vmul.f32 %v1880, %v1553
        %v1983 = vmul.f32 %v1883, %v1553
        %v1984 = vmul.f32 %v1886, %v1553
        %v1985 = vmul.f32 %v1889, %v1553
        %v1986 = vmul.f32 %v1892, %v1553
        %v1987 = vmul.f32 %v1895, %v1553
        %v1988 = vmul.f32 %v1898, %v1553
        %v1989 = vmul.f32 %v1901, %v1553
        %v1990 = vmul.f32 %v1904, %v1553
        %v1991 = vmul.f32 %v1907, %v1553
        %v1992 = vmul.f32 %v1910, %v1553
        %v1993 = vmul.f32 %v1913, %v1553
        %v1994 = vmul.f32 %v1916, %v1553
        %v1995 = vmul.f32 %v1919, %v1553
        %v1996 = vmul.f32 %v1922, %v1553
        %v1997 = vmul.f32 %v1925, %v1553
        %v1998 = vmul.f32 %v1928, %v1553
        %v1999 = vmul.f32 %v1931, %v1553
        %v2000 = vmul.f32 %v1934, %v1553
        %v2001 = vmul.f32 %v1937, %v1553
        %v2002 = vmul.f32 %v1554, %v1554
        %v2003 = vmul.f32 %v1555, %v1555
        %v2004 = vmul.f32 %v1556, %v1556
        %v2005 = vmul.f32 %v1557, %v1557
        %v2006 = vmul.f32 %v1558, %v1558
        %v2007 = vmul.f32 %v1559, %v1559
        %v2008 = vmul.f32 %v1560, %v1560
        %v2009 = vmul.f32 %v1561, %v1561
        %v2010 = vmul.f32 %v1562, %v1562
        %v2011 = vmul.f32 %v1563, %v1563
        %v2012 = vmul.f32 %v1564, %v1564
        %v2013 = vmul.f32 %v1565, %v1565
        %v2014 = vmul.f32 %v1566, %v1566
        %v2015 = vmul.f32 %v1567, %v1567
        %v2016 = vmul.f32 %v1568, %v1568
        %v2017 = vmul.f32 %v1569, %v1569
        %v2018 = vmul.f32 %v1570, %v1570
        %v2019 = vmul.f32 %v1571, %v1571
        %v2020 = vmul.f32 %v1572, %v1572
        %v2021 = vmul.f32 %v1573, %v1573
        %v2022 = vmul.f32 %v1574, %v1574
        %v2023 = vmul.f32 %v1575, %v1575
        %v2024 = vmul.f32 %v1576, %v1576
        %v2025 = vmul.f32 %v1577, %v1577
        %v2026 = vmul.f32 %v1578, %v1578
        %v2027 = vmul.f32 %v1579, %v1579
        %v2028 = vmul.f32 %v1580, %v1580
        %v2029 = vmul.f32 %v1581, %v1581
        %v2030 = vmul.f32 %v1582, %v1582
        %v2031 = vmul.f32 %v1583, %v1583
        %v2032 = vmul.f32 %v1584, %v1584
        %v2033 = vmul.f32 %v1585, %v1585
        %v2034 = vmul.f32 %v1586, %v1586
        %v2035 = vmul.f32 %v1587, %v1587
        %v2036 = vmul.f32 %v1588, %v1588
        %v2037 = vmul.f32 %v1589, %v1589
        %v2038 = vmul.f32 %v1590, %v1590
        %v2039 = vmul.f32 %v1591, %v1591
        %v2040 = vmul.f32 %v1592, %v1592
        %v2041 = vmul.f32 %v1593, %v1593
        %v2042 = vmul.f32 %v1594, %v1594
        %v2043 = vmul.f32 %v1595, %v1595
        %v2044 = vmul.f32 %v1596, %v1596
        %v2045 = vmul.f32 %v1597, %v1597
        %v2046 = vmul.f32 %v1598, %v1598
        %v2047 = vmul.f32 %v1599, %v1599
        %v2048 = vmul.f32 %v1600, %v1600
        %v2049 = vmul.f32 %v1601, %v1601
        %v2050 = vmul.f32 %v1602, %v1602
        %v2051 = vmul.f32 %v1603, %v1603
        %v2052 = vmul.f32 %v1604, %v1604
        %v2053 = vmul.f32 %v1605, %v1605
        %v2054 = vmul.f32 %v1606, %v1606
        %v2055 = vmul.f32 %v1607, %v1607
        %v2056 = vmul.f32 %v1608, %v1608
        %v2057 = vmul.f32 %v1609, %v1609
        %v2058 = vmul.f32 %v1610, %v1610
        %v2059 = vmul.f32 %v1611, %v1611
        %v2060 = vmul.f32 %v1612, %v1612
        %v2061 = vmul.f32 %v1613, %v1613
        %v2062 = vmul.f32 %v1614, %v1614
        %v2063 = vmul.f32 %v1615, %v1615
        %v2064 = vmul.f32 %v1616, %v1616
        %v2065 = vmul.f32 %v1617, %v1617
        %v2066 = vsub.f32 %v1938, %v2002
        %v2067 = vsub.f32 %v1939, %v2003
        %v2068 = vsub.f32 %v1940, %v2004
        %v2069 = vsub.f32 %v1941, %v2005
        %v2070 = vsub.f32 %v1942, %v2006
        %v2071 = vsub.f32 %v1943, %v2007
        %v2072 = vsub.f32 %v1944, %v2008
        %v2073 = vsub.f32 %v1945, %v2009
        %v2074 = vsub.f32 %v1946, %v2010
        %v2075 = vsub.f32 %v1947, %v2011
        %v2076 = vsub.f32 %v1948, %v2012
        %v2077 = vsub.f32 %v1949, %v2013
        %v2078 = vsub.f32 %v1950, %v2014
        %v2079 = vsub.f32 %v1951, %v2015
        %v2080 = vsub.f32 %v1952, %v2016
        %v2081 = vsub.f32 %v1953, %v2017
        %v2082 = vsub.f32 %v1954, %v2018
        %v2083 = vsub.f32 %v1955, %v2019
        %v2084 = vsub.f32 %v1956, %v2020
        %v2085 = vsub.f32 %v1957, %v2021
        %v2086 = vsub.f32 %v1958, %v2022
        %v2087 = vsub.f32 %v1959, %v2023
        %v2088 = vsub.f32 %v1960, %v2024
        %v2089 = vsub.f32 %v1961, %v2025
        %v2090 = vsub.f32 %v1962, %v2026
        %v2091 = vsub.f32 %v1963, %v2027
        %v2092 = vsub.f32 %v1964, %v2028
        %v2093 = vsub.f32 %v1965, %v2029
        %v2094 = vsub.f32 %v1966, %v2030
        %v2095 = vsub.f32 %v1967, %v2031
        %v2096 = vsub.f32 %v1968, %v2032
        %v2097 = vsub.f32 %v1969, %v2033
        %v2098 = vsub.f32 %v1970, %v2034
        %v2099 = vsub.f32 %v1971, %v2035
        %v2100 = vsub.f32 %v1972, %v2036
        %v2101 = vsub.f32 %v1973, %v2037
        %v2102 = vsub.f32 %v1974, %v2038
        %v2103 = vsub.f32 %v1975, %v2039
        %v2104 = vsub.f32 %v1976, %v2040
        %v2105 = vsub.f32 %v1977, %v2041
        %v2106 = vsub.f32 %v1978, %v2042
        %v2107 = vsub.f32 %v1979, %v2043
        %v2108 = vsub.f32 %v1980, %v2044
        %v2109 = vsub.f32 %v1981, %v2045
        %v2110 = vsub.f32 %v1982, %v2046
        %v2111 = vsub.f32 %v1983, %v2047
        %v2112 = vsub.f32 %v1984, %v2048
        %v2113 = vsub.f32 %v1985, %v2049
        %v2114 = vsub.f32 %v1986, %v2050
        %v2115 = vsub.f32 %v1987, %v2051
        %v2116 = vsub.f32 %v1988, %v2052
        %v2117 = vsub.f32 %v1989, %v2053
        %v2118 = vsub.f32 %v1990, %v2054
        %v2119 = vsub.f32 %v1991, %v2055
        %v2120 = vsub.f32 %v1992, %v2056
        %v2121 = vsub.f32 %v1993, %v2057
        %v2122 = vsub.f32 %v1994, %v2058
        %v2123 = vsub.f32 %v1995, %v2059
        %v2124 = vsub.f32 %v1996, %v2060
        %v2125 = vsub.f32 %v1997, %v2061
        %v2126 = vsub.f32 %v1998, %v2062
        %v2127 = vsub.f32 %v1999, %v2063
        %v2128 = vsub.f32 %v2000, %v2064
        %v2129 = vsub.f32 %v2001, %v2065
        %v2130 = vadd.f32 %v2066, 1e-12
        %v2131 = vadd.f32 %v2067, 1e-12
        %v2132 = vadd.f32 %v2068, 1e-12
        %v2133 = vadd.f32 %v2069, 1e-12
        %v2134 = vadd.f32 %v2070, 1e-12
        %v2135 = vadd.f32 %v2071, 1e-12
        %v2136 = vadd.f32 %v2072, 1e-12
        %v2137 = vadd.f32 %v2073, 1e-12
        %v2138 = vadd.f32 %v2074, 1e-12
        %v2139 = vadd.f32 %v2075, 1e-12
        %v2140 = vadd.f32 %v2076, 1e-12
        %v2141 = vadd.f32 %v2077, 1e-12
        %v2142 = vadd.f32 %v2078, 1e-12
        %v2143 = vadd.f32 %v2079, 1e-12
        %v2144 = vadd.f32 %v2080, 1e-12
        %v2145 = vadd.f32 %v2081, 1e-12
        %v2146 = vadd.f32 %v2082, 1e-12
        %v2147 = vadd.f32 %v2083, 1e-12
        %v2148 = vadd.f32 %v2084, 1e-12
        %v2149 = vadd.f32 %v2085, 1e-12
        %v2150 = vadd.f32 %v2086, 1e-12
        %v2151 = vadd.f32 %v2087, 1e-12
        %v2152 = vadd.f32 %v2088, 1e-12
        %v2153 = vadd.f32 %v2089, 1e-12
        %v2154 = vadd.f32 %v2090, 1e-12
        %v2155 = vadd.f32 %v2091, 1e-12
        %v2156 = vadd.f32 %v2092, 1e-12
        %v2157 = vadd.f32 %v2093, 1e-12
        %v2158 = vadd.f32 %v2094, 1e-12
        %v2159 = vadd.f32 %v2095, 1e-12
        %v2160 = vadd.f32 %v2096, 1e-12
        %v2161 = vadd.f32 %v2097, 1e-12
        %v2162 = vadd.f32 %v2098, 1e-12
        %v2163 = vadd.f32 %v2099, 1e-12
        %v2164 = vadd.f32 %v2100, 1e-12
        %v2165 = vadd.f32 %v2101, 1e-12
        %v2166 = vadd.f32 %v2102, 1e-12
        %v2167 = vadd.f32 %v2103, 1e-12
        %v2168 = vadd.f32 %v2104, 1e-12
        %v2169 = vadd.f32 %v2105, 1e-12
        %v2170 = vadd.f32 %v2106, 1e-12
        %v2171 = vadd.f32 %v2107, 1e-12
        %v2172 = vadd.f32 %v2108, 1e-12
        %v2173 = vadd.f32 %v2109, 1e-12
        %v2174 = vadd.f32 %v2110, 1e-12
        %v2175 = vadd.f32 %v2111, 1e-12
        %v2176 = vadd.f32 %v2112, 1e-12
        %v2177 = vadd.f32 %v2113, 1e-12
        %v2178 = vadd.f32 %v2114, 1e-12
        %v2179 = vadd.f32 %v2115, 1e-12
        %v2180 = vadd.f32 %v2116, 1e-12
        %v2181 = vadd.f32 %v2117, 1e-12
        %v2182 = vadd.f32 %v2118, 1e-12
        %v2183 = vadd.f32 %v2119, 1e-12
        %v2184 = vadd.f32 %v2120, 1e-12
        %v2185 = vadd.f32 %v2121, 1e-12
        %v2186 = vadd.f32 %v2122, 1e-12
        %v2187 = vadd.f32 %v2123, 1e-12
        %v2188 = vadd.f32 %v2124, 1e-12
        %v2189 = vadd.f32 %v2125, 1e-12
        %v2190 = vadd.f32 %v2126, 1e-12
        %v2191 = vadd.f32 %v2127, 1e-12
        %v2192 = vadd.f32 %v2128, 1e-12
        %v2193 = vadd.f32 %v2129, 1e-12
        %v2194 = vrsqrt.pop %v2130
        %v2195 = vrsqrt.pop %v2131
        %v2196 = vrsqrt.pop %v2132
        %v2197 = vrsqrt.pop %v2133
        %v2198 = vrsqrt.pop %v2134
        %v2199 = vrsqrt.pop %v2135
        %v2200 = vrsqrt.pop %v2136
        %v2201 = vrsqrt.pop %v2137
        %v2202 = vrsqrt.pop %v2138
        %v2203 = vrsqrt.pop %v2139
        %v2204 = vrsqrt.pop %v2140
        %v2205 = vrsqrt.pop %v2141
        %v2206 = vrsqrt.pop %v2142
        %v2207 = vrsqrt.pop %v2143
        %v2208 = vrsqrt.pop %v2144
        %v2209 = vrsqrt.pop %v2145
        %v2210 = vrsqrt.pop %v2146
        %v2211 = vrsqrt.pop %v2147
        %v2212 = vrsqrt.pop %v2148
        %v2213 = vrsqrt.pop %v2149
        %v2214 = vrsqrt.pop %v2150
        %v2215 = vrsqrt.pop %v2151
        %v2216 = vrsqrt.pop %v2152
        %v2217 = vrsqrt.pop %v2153
        %v2218 = vrsqrt.pop %v2154
        %v2219 = vrsqrt.pop %v2155
        %v2220 = vrsqrt.pop %v2156
        %v2221 = vrsqrt.pop %v2157
        %v2222 = vrsqrt.pop %v2158
        %v2223 = vrsqrt.pop %v2159
        %v2224 = vrsqrt.pop %v2160
        %v2225 = vrsqrt.pop %v2161
        %v2226 = vrsqrt.pop %v2162
        %v2227 = vrsqrt.pop %v2163
        %v2228 = vrsqrt.pop %v2164
        %v2229 = vrsqrt.pop %v2165
        %v2230 = vrsqrt.pop %v2166
        %v2231 = vrsqrt.pop %v2167
        %v2232 = vrsqrt.pop %v2168
        %v2233 = vrsqrt.pop %v2169
        %v2234 = vrsqrt.pop %v2170
        %v2235 = vrsqrt.pop %v2171
        %v2236 = vrsqrt.pop %v2172
        %v2237 = vrsqrt.pop %v2173
        %v2238 = vrsqrt.pop %v2174
        %v2239 = vrsqrt.pop %v2175
        %v2240 = vrsqrt.pop %v2176
        %v2241 = vrsqrt.pop %v2177
        %v2242 = vrsqrt.pop %v2178
        %v2243 = vrsqrt.pop %v2179
        %v2244 = vrsqrt.pop %v2180
        %v2245 = vrsqrt.pop %v2181
        %v2246 = vrsqrt.pop %v2182
        %v2247 = vrsqrt.pop %v2183
        %v2248 = vrsqrt.pop %v2184
        %v2249 = vrsqrt.pop %v2185
        %v2250 = vrsqrt.pop %v2186
        %v2251 = vrsqrt.pop %v2187
        %v2252 = vrsqrt.pop %v2188
        %v2253 = vrsqrt.pop %v2189
        %v2254 = vrsqrt.pop %v2190
        %v2255 = vrsqrt.pop %v2191
        %v2256 = vrsqrt.pop %v2192
        %v2257 = vrsqrt.pop %v2193
        %v2258 = vsub.f32 %v1233, %v1554
        %v2259 = vsub.f32 %v1234, %v1554
        %v2260 = vsub.f32 %v1235, %v1555
        %v2261 = vsub.f32 %v1236, %v1555
        %v2262 = vsub.f32 %v1237, %v1556
        %v2263 = vsub.f32 %v1238, %v1556
        %v2264 = vsub.f32 %v1239, %v1557
        %v2265 = vsub.f32 %v1240, %v1557
        %v2266 = vsub.f32 %v1241, %v1558
        %v2267 = vsub.f32 %v1242, %v1558
        %v2268 = vsub.f32 %v1243, %v1559
        %v2269 = vsub.f32 %v1244, %v1559
        %v2270 = vsub.f32 %v1245, %v1560
        %v2271 = vsub.f32 %v1246, %v1560
        %v2272 = vsub.f32 %v1247, %v1561
        %v2273 = vsub.f32 %v1248, %v1561
        %v2274 = vsub.f32 %v1249, %v1562
        %v2275 = vsub.f32 %v1250, %v1562
        %v2276 = vsub.f32 %v1251, %v1563
        %v2277 = vsub.f32 %v1252, %v1563
        %v2278 = vsub.f32 %v1253, %v1564
        %v2279 = vsub.f32 %v1254, %v1564
        %v2280 = vsub.f32 %v1255, %v1565
        %v2281 = vsub.f32 %v1256, %v1565
        %v2282 = vsub.f32 %v1257, %v1566
        %v2283 = vsub.f32 %v1258, %v1566
        %v2284 = vsub.f32 %v1259, %v1567
        %v2285 = vsub.f32 %v1260, %v1567
        %v2286 = vsub.f32 %v1261, %v1568
        %v2287 = vsub.f32 %v1262, %v1568
        %v2288 = vsub.f32 %v1263, %v1569
        %v2289 = vsub.f32 %v1264, %v1569
        %v2290 = vsub.f32 %v1265, %v1570
        %v2291 = vsub.f32 %v1266, %v1570
        %v2292 = vsub.f32 %v1267, %v1571
        %v2293 = vsub.f32 %v1268, %v1571
        %v2294 = vsub.f32 %v1269, %v1572
        %v2295 = vsub.f32 %v1270, %v1572
        %v2296 = vsub.f32 %v1271, %v1573
        %v2297 = vsub.f32 %v1272, %v1573
        %v2298 = vsub.f32 %v1273, %v1574
        %v2299 = vsub.f32 %v1274, %v1574
        %v2300 = vsub.f32 %v1275, %v1575
        %v2301 = vsub.f32 %v1276, %v1575
        %v2302 = vsub.f32 %v1277, %v1576
        %v2303 = vsub.f32 %v1278, %v1576
        %v2304 = vsub.f32 %v1279, %v1577
        %v2305 = vsub.f32 %v1280, %v1577
        %v2306 = vsub.f32 %v1281, %v1578
        %v2307 = vsub.f32 %v1282, %v1578
        %v2308 = vsub.f32 %v1283, %v1579
        %v2309 = vsub.f32 %v1284, %v1579
        %v2310 = vsub.f32 %v1285, %v1580
        %v2311 = vsub.f32 %v1286, %v1580
        %v2312 = vsub.f32 %v1287, %v1581
        %v2313 = vsub.f32 %v1288, %v1581
        %v2314 = vsub.f32 %v1289, %v1582
        %v2315 = vsub.f32 %v1290, %v1582
        %v2316 = vsub.f32 %v1291, %v1583
        %v2317 = vsub.f32 %v1292, %v1583
        %v2318 = vsub.f32 %v1293, %v1584
        %v2319 = vsub.f32 %v1294, %v1584
        %v2320 = vsub.f32 %v1295, %v1585
        %v2321 = vsub.f32 %v1296, %v1585
        %v2322 = vsub.f32 %v1297, %v1586
        %v2323 = vsub.f32 %v1298, %v1586
        %v2324 = vsub.f32 %v1299, %v1587
        %v2325 = vsub.f32 %v1300, %v1587
        %v2326 = vsub.f32 %v1301, %v1588
        %v2327 = vsub.f32 %v1302, %v1588
        %v2328 = vsub.f32 %v1303, %v1589
        %v2329 = vsub.f32 %v1304, %v1589
        %v2330 = vsub.f32 %v1305, %v1590
        %v2331 = vsub.f32 %v1306, %v1590
        %v2332 = vsub.f32 %v1307, %v1591
        %v2333 = vsub.f32 %v1308, %v1591
        %v2334 = vsub.f32 %v1309, %v1592
        %v2335 = vsub.f32 %v1310, %v1592
        %v2336 = vsub.f32 %v1311, %v1593
        %v2337 = vsub.f32 %v1312, %v1593
        %v2338 = vsub.f32 %v1313, %v1594
        %v2339 = vsub.f32 %v1314, %v1594
        %v2340 = vsub.f32 %v1315, %v1595
        %v2341 = vsub.f32 %v1316, %v1595
        %v2342 = vsub.f32 %v1317, %v1596
        %v2343 = vsub.f32 %v1318, %v1596
        %v2344 = vsub.f32 %v1319, %v1597
        %v2345 = vsub.f32 %v1320, %v1597
        %v2346 = vsub.f32 %v1321, %v1598
        %v2347 = vsub.f32 %v1322, %v1598
        %v2348 = vsub.f32 %v1323, %v1599
        %v2349 = vsub.f32 %v1324, %v1599
        %v2350 = vsub.f32 %v1325, %v1600
        %v2351 = vsub.f32 %v1326, %v1600
        %v2352 = vsub.f32 %v1327, %v1601
        %v2353 = vsub.f32 %v1328, %v1601
        %v2354 = vsub.f32 %v1329, %v1602
        %v2355 = vsub.f32 %v1330, %v1602
        %v2356 = vsub.f32 %v1331, %v1603
        %v2357 = vsub.f32 %v1332, %v1603
        %v2358 = vsub.f32 %v1333, %v1604
        %v2359 = vsub.f32 %v1334, %v1604
        %v2360 = vsub.f32 %v1335, %v1605
        %v2361 = vsub.f32 %v1336, %v1605
        %v2362 = vsub.f32 %v1337, %v1606
        %v2363 = vsub.f32 %v1338, %v1606
        %v2364 = vsub.f32 %v1339, %v1607
        %v2365 = vsub.f32 %v1340, %v1607
        %v2366 = vsub.f32 %v1341, %v1608
        %v2367 = vsub.f32 %v1342, %v1608
        %v2368 = vsub.f32 %v1343, %v1609
        %v2369 = vsub.f32 %v1344, %v1609
        %v2370 = vsub.f32 %v1345, %v1610
        %v2371 = vsub.f32 %v1346, %v1610
        %v2372 = vsub.f32 %v1347, %v1611
        %v2373 = vsub.f32 %v1348, %v1611
        %v2374 = vsub.f32 %v1349, %v1612
        %v2375 = vsub.f32 %v1350, %v1612
        %v2376 = vsub.f32 %v1351, %v1613
        %v2377 = vsub.f32 %v1352, %v1613
        %v2378 = vsub.f32 %v1353, %v1614
        %v2379 = vsub.f32 %v1354, %v1614
        %v2380 = vsub.f32 %v1355, %v1615
        %v2381 = vsub.f32 %v1356, %v1615
        %v2382 = vsub.f32 %v1357, %v1616
        %v2383 = vsub.f32 %v1358, %v1616
        %v2384 = vsub.f32 %v1359, %v1617
        %v2385 = vsub.f32 %v1360, %v1617
        %v2386 = vmul.f32 %v2258, %v2194
        %v2387 = vmul.f32 %v2259, %v2194
        %v2388 = vmul.f32 %v2260, %v2195
        %v2389 = vmul.f32 %v2261, %v2195
        %v2390 = vmul.f32 %v2262, %v2196
        %v2391 = vmul.f32 %v2263, %v2196
        %v2392 = vmul.f32 %v2264, %v2197
        %v2393 = vmul.f32 %v2265, %v2197
        %v2394 = vmul.f32 %v2266, %v2198
        %v2395 = vmul.f32 %v2267, %v2198
        %v2396 = vmul.f32 %v2268, %v2199
        %v2397 = vmul.f32 %v2269, %v2199
        %v2398 = vmul.f32 %v2270, %v2200
        %v2399 = vmul.f32 %v2271, %v2200
        %v2400 = vmul.f32 %v2272, %v2201
        %v2401 = vmul.f32 %v2273, %v2201
        %v2402 = vmul.f32 %v2274, %v2202
        %v2403 = vmul.f32 %v2275, %v2202
        %v2404 = vmul.f32 %v2276, %v2203
        %v2405 = vmul.f32 %v2277, %v2203
        %v2406 = vmul.f32 %v2278, %v2204
        %v2407 = vmul.f32 %v2279, %v2204
        %v2408 = vmul.f32 %v2280, %v2205
        %v2409 = vmul.f32 %v2281, %v2205
        %v2410 = vmul.f32 %v2282, %v2206
        %v2411 = vmul.f32 %v2283, %v2206
        %v2412 = vmul.f32 %v2284, %v2207
        %v2413 = vmul.f32 %v2285, %v2207
        %v2414 = vmul.f32 %v2286, %v2208
        %v2415 = vmul.f32 %v2287, %v2208
        %v2416 = vmul.f32 %v2288, %v2209
        %v2417 = vmul.f32 %v2289, %v2209
        %v2418 = vmul.f32 %v2290, %v2210
        %v2419 = vmul.f32 %v2291, %v2210
        %v2420 = vmul.f32 %v2292, %v2211
        %v2421 = vmul.f32 %v2293, %v2211
        %v2422 = vmul.f32 %v2294, %v2212
        %v2423 = vmul.f32 %v2295, %v2212
        %v2424 = vmul.f32 %v2296, %v2213
        %v2425 = vmul.f32 %v2297, %v2213
        %v2426 = vmul.f32 %v2298, %v2214
        %v2427 = vmul.f32 %v2299, %v2214
        %v2428 = vmul.f32 %v2300, %v2215
        %v2429 = vmul.f32 %v2301, %v2215
        %v2430 = vmul.f32 %v2302, %v2216
        %v2431 = vmul.f32 %v2303, %v2216
        %v2432 = vmul.f32 %v2304, %v2217
        %v2433 = vmul.f32 %v2305, %v2217
        %v2434 = vmul.f32 %v2306, %v2218
        %v2435 = vmul.f32 %v2307, %v2218
        %v2436 = vmul.f32 %v2308, %v2219
        %v2437 = vmul.f32 %v2309, %v2219
        %v2438 = vmul.f32 %v2310, %v2220
        %v2439 = vmul.f32 %v2311, %v2220
        %v2440 = vmul.f32 %v2312, %v2221
        %v2441 = vmul.f32 %v2313, %v2221
        %v2442 = vmul.f32 %v2314, %v2222
        %v2443 = vmul.f32 %v2315, %v2222
        %v2444 = vmul.f32 %v2316, %v2223
        %v2445 = vmul.f32 %v2317, %v2223
        %v2446 = vmul.f32 %v2318, %v2224
        %v2447 = vmul.f32 %v2319, %v2224
        %v2448 = vmul.f32 %v2320, %v2225
        %v2449 = vmul.f32 %v2321, %v2225
        %v2450 = vmul.f32 %v2322, %v2226
        %v2451 = vmul.f32 %v2323, %v2226
        %v2452 = vmul.f32 %v2324, %v2227
        %v2453 = vmul.f32 %v2325, %v2227
        %v2454 = vmul.f32 %v2326, %v2228
        %v2455 = vmul.f32 %v2327, %v2228
        %v2456 = vmul.f32 %v2328, %v2229
        %v2457 = vmul.f32 %v2329, %v2229
        %v2458 = vmul.f32 %v2330, %v2230
        %v2459 = vmul.f32 %v2331, %v2230
        %v2460 = vmul.f32 %v2332, %v2231
        %v2461 = vmul.f32 %v2333, %v2231
        %v2462 = vmul.f32 %v2334, %v2232
        %v2463 = vmul.f32 %v2335, %v2232
        %v2464 = vmul.f32 %v2336, %v2233
        %v2465 = vmul.f32 %v2337, %v2233
        %v2466 = vmul.f32 %v2338, %v2234
        %v2467 = vmul.f32 %v2339, %v2234
        %v2468 = vmul.f32 %v2340, %v2235
        %v2469 = vmul.f32 %v2341, %v2235
        %v2470 = vmul.f32 %v2342, %v2236
        %v2471 = vmul.f32 %v2343, %v2236
        %v2472 = vmul.f32 %v2344, %v2237
        %v2473 = vmul.f32 %v2345, %v2237
        %v2474 = vmul.f32 %v2346, %v2238
        %v2475 = vmul.f32 %v2347, %v2238
        %v2476 = vmul.f32 %v2348, %v2239
        %v2477 = vmul.f32 %v2349, %v2239
        %v2478 = vmul.f32 %v2350, %v2240
        %v2479 = vmul.f32 %v2351, %v2240
        %v2480 = vmul.f32 %v2352, %v2241
        %v2481 = vmul.f32 %v2353, %v2241
        %v2482 = vmul.f32 %v2354, %v2242
        %v2483 = vmul.f32 %v2355, %v2242
        %v2484 = vmul.f32 %v2356, %v2243
        %v2485 = vmul.f32 %v2357, %v2243
        %v2486 = vmul.f32 %v2358, %v2244
        %v2487 = vmul.f32 %v2359, %v2244
        %v2488 = vmul.f32 %v2360, %v2245
        %v2489 = vmul.f32 %v2361, %v2245
        %v2490 = vmul.f32 %v2362, %v2246
        %v2491 = vmul.f32 %v2363, %v2246
        %v2492 = vmul.f32 %v2364, %v2247
        %v2493 = vmul.f32 %v2365, %v2247
        %v2494 = vmul.f32 %v2366, %v2248
        %v2495 = vmul.f32 %v2367, %v2248
        %v2496 = vmul.f32 %v2368, %v2249
        %v2497 = vmul.f32 %v2369, %v2249
        %v2498 = vmul.f32 %v2370, %v2250
        %v2499 = vmul.f32 %v2371, %v2250
        %v2500 = vmul.f32 %v2372, %v2251
        %v2501 = vmul.f32 %v2373, %v2251
        %v2502 = vmul.f32 %v2374, %v2252
        %v2503 = vmul.f32 %v2375, %v2252
        %v2504 = vmul.f32 %v2376, %v2253
        %v2505 = vmul.f32 %v2377, %v2253
        %v2506 = vmul.f32 %v2378, %v2254
        %v2507 = vmul.f32 %v2379, %v2254
        %v2508 = vmul.f32 %v2380, %v2255
        %v2509 = vmul.f32 %v2381, %v2255
        %v2510 = vmul.f32 %v2382, %v2256
        %v2511 = vmul.f32 %v2383, %v2256
        %v2512 = vmul.f32 %v2384, %v2257
        %v2513 = vmul.f32 %v2385, %v2257
        %v2514 = vld [vmem:[%s4] sm:$0x3]
        %v2516 = vlaneseq
        %v2517 = vshrl.u32 %v2516, 7
        %v2518 = vsub.s32 0, %v2517
        %v2519 = vrot.slane %v2514, %v2518
        %v2520 = vlaneseq
        %v2521 = vshrl.u32 %v2520, 7
        %v2522 = vsub.s32 1, %v2521
        %v2523 = vrot.slane %v2514, %v2522
        %v2526 = vmul.f32 %v2386, %v2519
        %v2527 = vmul.f32 %v2387, %v2523
        %v2528 = vmul.f32 %v2388, %v2519
        %v2529 = vmul.f32 %v2389, %v2523
        %v2530 = vmul.f32 %v2390, %v2519
        %v2531 = vmul.f32 %v2391, %v2523
        %v2532 = vmul.f32 %v2392, %v2519
        %v2533 = vmul.f32 %v2393, %v2523
        %v2534 = vmul.f32 %v2394, %v2519
        %v2535 = vmul.f32 %v2395, %v2523
        %v2536 = vmul.f32 %v2396, %v2519
        %v2537 = vmul.f32 %v2397, %v2523
        %v2538 = vmul.f32 %v2398, %v2519
        %v2539 = vmul.f32 %v2399, %v2523
        %v2540 = vmul.f32 %v2400, %v2519
        %v2541 = vmul.f32 %v2401, %v2523
        %v2542 = vmul.f32 %v2402, %v2519
        %v2543 = vmul.f32 %v2403, %v2523
        %v2544 = vmul.f32 %v2404, %v2519
        %v2545 = vmul.f32 %v2405, %v2523
        %v2546 = vmul.f32 %v2406, %v2519
        %v2547 = vmul.f32 %v2407, %v2523
        %v2548 = vmul.f32 %v2408, %v2519
        %v2549 = vmul.f32 %v2409, %v2523
        %v2550 = vmul.f32 %v2410, %v2519
        %v2551 = vmul.f32 %v2411, %v2523
        %v2552 = vmul.f32 %v2412, %v2519
        %v2553 = vmul.f32 %v2413, %v2523
        %v2554 = vmul.f32 %v2414, %v2519
        %v2555 = vmul.f32 %v2415, %v2523
        %v2556 = vmul.f32 %v2416, %v2519
        %v2557 = vmul.f32 %v2417, %v2523
        %v2558 = vmul.f32 %v2418, %v2519
        %v2559 = vmul.f32 %v2419, %v2523
        %v2560 = vmul.f32 %v2420, %v2519
        %v2561 = vmul.f32 %v2421, %v2523
        %v2562 = vmul.f32 %v2422, %v2519
        %v2563 = vmul.f32 %v2423, %v2523
        %v2564 = vmul.f32 %v2424, %v2519
        %v2565 = vmul.f32 %v2425, %v2523
        %v2566 = vmul.f32 %v2426, %v2519
        %v2567 = vmul.f32 %v2427, %v2523
        %v2568 = vmul.f32 %v2428, %v2519
        %v2569 = vmul.f32 %v2429, %v2523
        %v2570 = vmul.f32 %v2430, %v2519
        %v2571 = vmul.f32 %v2431, %v2523
        %v2572 = vmul.f32 %v2432, %v2519
        %v2573 = vmul.f32 %v2433, %v2523
        %v2574 = vmul.f32 %v2434, %v2519
        %v2575 = vmul.f32 %v2435, %v2523
        %v2576 = vmul.f32 %v2436, %v2519
        %v2577 = vmul.f32 %v2437, %v2523
        %v2578 = vmul.f32 %v2438, %v2519
        %v2579 = vmul.f32 %v2439, %v2523
        %v2580 = vmul.f32 %v2440, %v2519
        %v2581 = vmul.f32 %v2441, %v2523
        %v2582 = vmul.f32 %v2442, %v2519
        %v2583 = vmul.f32 %v2443, %v2523
        %v2584 = vmul.f32 %v2444, %v2519
        %v2585 = vmul.f32 %v2445, %v2523
        %v2586 = vmul.f32 %v2446, %v2519
        %v2587 = vmul.f32 %v2447, %v2523
        %v2588 = vmul.f32 %v2448, %v2519
        %v2589 = vmul.f32 %v2449, %v2523
        %v2590 = vmul.f32 %v2450, %v2519
        %v2591 = vmul.f32 %v2451, %v2523
        %v2592 = vmul.f32 %v2452, %v2519
        %v2593 = vmul.f32 %v2453, %v2523
        %v2594 = vmul.f32 %v2454, %v2519
        %v2595 = vmul.f32 %v2455, %v2523
        %v2596 = vmul.f32 %v2456, %v2519
        %v2597 = vmul.f32 %v2457, %v2523
        %v2598 = vmul.f32 %v2458, %v2519
        %v2599 = vmul.f32 %v2459, %v2523
        %v2600 = vmul.f32 %v2460, %v2519
        %v2601 = vmul.f32 %v2461, %v2523
        %v2602 = vmul.f32 %v2462, %v2519
        %v2603 = vmul.f32 %v2463, %v2523
        %v2604 = vmul.f32 %v2464, %v2519
        %v2605 = vmul.f32 %v2465, %v2523
        %v2606 = vmul.f32 %v2466, %v2519
        %v2607 = vmul.f32 %v2467, %v2523
        %v2608 = vmul.f32 %v2468, %v2519
        %v2609 = vmul.f32 %v2469, %v2523
        %v2610 = vmul.f32 %v2470, %v2519
        %v2611 = vmul.f32 %v2471, %v2523
        %v2612 = vmul.f32 %v2472, %v2519
        %v2613 = vmul.f32 %v2473, %v2523
        %v2614 = vmul.f32 %v2474, %v2519
        %v2615 = vmul.f32 %v2475, %v2523
        %v2616 = vmul.f32 %v2476, %v2519
        %v2617 = vmul.f32 %v2477, %v2523
        %v2618 = vmul.f32 %v2478, %v2519
        %v2619 = vmul.f32 %v2479, %v2523
        %v2620 = vmul.f32 %v2480, %v2519
        %v2621 = vmul.f32 %v2481, %v2523
        %v2622 = vmul.f32 %v2482, %v2519
        %v2623 = vmul.f32 %v2483, %v2523
        %v2624 = vmul.f32 %v2484, %v2519
        %v2625 = vmul.f32 %v2485, %v2523
        %v2626 = vmul.f32 %v2486, %v2519
        %v2627 = vmul.f32 %v2487, %v2523
        %v2628 = vmul.f32 %v2488, %v2519
        %v2629 = vmul.f32 %v2489, %v2523
        %v2630 = vmul.f32 %v2490, %v2519
        %v2631 = vmul.f32 %v2491, %v2523
        %v2632 = vmul.f32 %v2492, %v2519
        %v2633 = vmul.f32 %v2493, %v2523
        %v2634 = vmul.f32 %v2494, %v2519
        %v2635 = vmul.f32 %v2495, %v2523
        %v2636 = vmul.f32 %v2496, %v2519
        %v2637 = vmul.f32 %v2497, %v2523
        %v2638 = vmul.f32 %v2498, %v2519
        %v2639 = vmul.f32 %v2499, %v2523
        %v2640 = vmul.f32 %v2500, %v2519
        %v2641 = vmul.f32 %v2501, %v2523
        %v2642 = vmul.f32 %v2502, %v2519
        %v2643 = vmul.f32 %v2503, %v2523
        %v2644 = vmul.f32 %v2504, %v2519
        %v2645 = vmul.f32 %v2505, %v2523
        %v2646 = vmul.f32 %v2506, %v2519
        %v2647 = vmul.f32 %v2507, %v2523
        %v2648 = vmul.f32 %v2508, %v2519
        %v2649 = vmul.f32 %v2509, %v2523
        %v2650 = vmul.f32 %v2510, %v2519
        %v2651 = vmul.f32 %v2511, %v2523
        %v2652 = vmul.f32 %v2512, %v2519
        %v2653 = vmul.f32 %v2513, %v2523
        %v2654 = vld [vmem:[%s5] sm:$0x3]
        %v2656 = vlaneseq
        %v2657 = vshrl.u32 %v2656, 7
        %v2658 = vsub.s32 0, %v2657
        %v2659 = vrot.slane %v2654, %v2658
        %v2660 = vlaneseq
        %v2661 = vshrl.u32 %v2660, 7
        %v2662 = vsub.s32 1, %v2661
        %v2663 = vrot.slane %v2654, %v2662
        %v2666 = vadd.f32 %v2526, %v2659
        %v2667 = vadd.f32 %v2527, %v2663
        %v2668 = vadd.f32 %v2528, %v2659
        %v2669 = vadd.f32 %v2529, %v2663
        %v2670 = vadd.f32 %v2530, %v2659
        %v2671 = vadd.f32 %v2531, %v2663
        %v2672 = vadd.f32 %v2532, %v2659
        %v2673 = vadd.f32 %v2533, %v2663
        %v2674 = vadd.f32 %v2534, %v2659
        %v2675 = vadd.f32 %v2535, %v2663
        %v2676 = vadd.f32 %v2536, %v2659
        %v2677 = vadd.f32 %v2537, %v2663
        %v2678 = vadd.f32 %v2538, %v2659
        %v2679 = vadd.f32 %v2539, %v2663
        %v2680 = vadd.f32 %v2540, %v2659
        %v2681 = vadd.f32 %v2541, %v2663
        %v2682 = vadd.f32 %v2542, %v2659
        %v2683 = vadd.f32 %v2543, %v2663
        %v2684 = vadd.f32 %v2544, %v2659
        %v2685 = vadd.f32 %v2545, %v2663
        %v2686 = vadd.f32 %v2546, %v2659
        %v2687 = vadd.f32 %v2547, %v2663
        %v2688 = vadd.f32 %v2548, %v2659
        %v2689 = vadd.f32 %v2549, %v2663
        %v2690 = vadd.f32 %v2550, %v2659
        %v2691 = vadd.f32 %v2551, %v2663
        %v2692 = vadd.f32 %v2552, %v2659
        %v2693 = vadd.f32 %v2553, %v2663
        %v2694 = vadd.f32 %v2554, %v2659
        %v2695 = vadd.f32 %v2555, %v2663
        %v2696 = vadd.f32 %v2556, %v2659
        %v2697 = vadd.f32 %v2557, %v2663
        %v2698 = vadd.f32 %v2558, %v2659
        %v2699 = vadd.f32 %v2559, %v2663
        %v2700 = vadd.f32 %v2560, %v2659
        %v2701 = vadd.f32 %v2561, %v2663
        %v2702 = vadd.f32 %v2562, %v2659
        %v2703 = vadd.f32 %v2563, %v2663
        %v2704 = vadd.f32 %v2564, %v2659
        %v2705 = vadd.f32 %v2565, %v2663
        %v2706 = vadd.f32 %v2566, %v2659
        %v2707 = vadd.f32 %v2567, %v2663
        %v2708 = vadd.f32 %v2568, %v2659
        %v2709 = vadd.f32 %v2569, %v2663
        %v2710 = vadd.f32 %v2570, %v2659
        %v2711 = vadd.f32 %v2571, %v2663
        %v2712 = vadd.f32 %v2572, %v2659
        %v2713 = vadd.f32 %v2573, %v2663
        %v2714 = vadd.f32 %v2574, %v2659
        %v2715 = vadd.f32 %v2575, %v2663
        %v2716 = vadd.f32 %v2576, %v2659
        %v2717 = vadd.f32 %v2577, %v2663
        %v2718 = vadd.f32 %v2578, %v2659
        %v2719 = vadd.f32 %v2579, %v2663
        %v2720 = vadd.f32 %v2580, %v2659
        %v2721 = vadd.f32 %v2581, %v2663
        %v2722 = vadd.f32 %v2582, %v2659
        %v2723 = vadd.f32 %v2583, %v2663
        %v2724 = vadd.f32 %v2584, %v2659
        %v2725 = vadd.f32 %v2585, %v2663
        %v2726 = vadd.f32 %v2586, %v2659
        %v2727 = vadd.f32 %v2587, %v2663
        %v2728 = vadd.f32 %v2588, %v2659
        %v2729 = vadd.f32 %v2589, %v2663
        %v2730 = vadd.f32 %v2590, %v2659
        %v2731 = vadd.f32 %v2591, %v2663
        %v2732 = vadd.f32 %v2592, %v2659
        %v2733 = vadd.f32 %v2593, %v2663
        %v2734 = vadd.f32 %v2594, %v2659
        %v2735 = vadd.f32 %v2595, %v2663
        %v2736 = vadd.f32 %v2596, %v2659
        %v2737 = vadd.f32 %v2597, %v2663
        %v2738 = vadd.f32 %v2598, %v2659
        %v2739 = vadd.f32 %v2599, %v2663
        %v2740 = vadd.f32 %v2600, %v2659
        %v2741 = vadd.f32 %v2601, %v2663
        %v2742 = vadd.f32 %v2602, %v2659
        %v2743 = vadd.f32 %v2603, %v2663
        %v2744 = vadd.f32 %v2604, %v2659
        %v2745 = vadd.f32 %v2605, %v2663
        %v2746 = vadd.f32 %v2606, %v2659
        %v2747 = vadd.f32 %v2607, %v2663
        %v2748 = vadd.f32 %v2608, %v2659
        %v2749 = vadd.f32 %v2609, %v2663
        %v2750 = vadd.f32 %v2610, %v2659
        %v2751 = vadd.f32 %v2611, %v2663
        %v2752 = vadd.f32 %v2612, %v2659
        %v2753 = vadd.f32 %v2613, %v2663
        %v2754 = vadd.f32 %v2614, %v2659
        %v2755 = vadd.f32 %v2615, %v2663
        %v2756 = vadd.f32 %v2616, %v2659
        %v2757 = vadd.f32 %v2617, %v2663
        %v2758 = vadd.f32 %v2618, %v2659
        %v2759 = vadd.f32 %v2619, %v2663
        %v2760 = vadd.f32 %v2620, %v2659
        %v2761 = vadd.f32 %v2621, %v2663
        %v2762 = vadd.f32 %v2622, %v2659
        %v2763 = vadd.f32 %v2623, %v2663
        %v2764 = vadd.f32 %v2624, %v2659
        %v2765 = vadd.f32 %v2625, %v2663
        %v2766 = vadd.f32 %v2626, %v2659
        %v2767 = vadd.f32 %v2627, %v2663
        %v2768 = vadd.f32 %v2628, %v2659
        %v2769 = vadd.f32 %v2629, %v2663
        %v2770 = vadd.f32 %v2630, %v2659
        %v2771 = vadd.f32 %v2631, %v2663
        %v2772 = vadd.f32 %v2632, %v2659
        %v2773 = vadd.f32 %v2633, %v2663
        %v2774 = vadd.f32 %v2634, %v2659
        %v2775 = vadd.f32 %v2635, %v2663
        %v2776 = vadd.f32 %v2636, %v2659
        %v2777 = vadd.f32 %v2637, %v2663
        %v2778 = vadd.f32 %v2638, %v2659
        %v2779 = vadd.f32 %v2639, %v2663
        %v2780 = vadd.f32 %v2640, %v2659
        %v2781 = vadd.f32 %v2641, %v2663
        %v2782 = vadd.f32 %v2642, %v2659
        %v2783 = vadd.f32 %v2643, %v2663
        %v2784 = vadd.f32 %v2644, %v2659
        %v2785 = vadd.f32 %v2645, %v2663
        %v2786 = vadd.f32 %v2646, %v2659
        %v2787 = vadd.f32 %v2647, %v2663
        %v2788 = vadd.f32 %v2648, %v2659
        %v2789 = vadd.f32 %v2649, %v2663
        %v2790 = vadd.f32 %v2650, %v2659
        %v2791 = vadd.f32 %v2651, %v2663
        %v2792 = vadd.f32 %v2652, %v2659
        %v2793 = vadd.f32 %v2653, %v2663
        %2794 = vst [vmem:[%s337] sm:$0xff] %v2666
        %2795 = vst [vmem:[%s337 + $0x8] sm:$0xff] %v2667
        %2796 = vst [vmem:[%s337 + $0x10] sm:$0xff] %v2668
        %2797 = vst [vmem:[%s337 + $0x18] sm:$0xff] %v2669
        %2798 = vst [vmem:[%s337 + $0x20] sm:$0xff] %v2670
        %2799 = vst [vmem:[%s337 + $0x28] sm:$0xff] %v2671
        %2800 = vst [vmem:[%s337 + $0x30] sm:$0xff] %v2672
        %2801 = vst [vmem:[%s337 + $0x38] sm:$0xff] %v2673
        %2802 = vst [vmem:[%s337 + $0x40] sm:$0xff] %v2674
        %2803 = vst [vmem:[%s337 + $0x48] sm:$0xff] %v2675
        %2804 = vst [vmem:[%s337 + $0x50] sm:$0xff] %v2676
        %2805 = vst [vmem:[%s337 + $0x58] sm:$0xff] %v2677
        %2806 = vst [vmem:[%s337 + $0x60] sm:$0xff] %v2678
        %2807 = vst [vmem:[%s337 + $0x68] sm:$0xff] %v2679
        %2808 = vst [vmem:[%s337 + $0x70] sm:$0xff] %v2680
        %2809 = vst [vmem:[%s337 + $0x78] sm:$0xff] %v2681
        %2810 = vst [vmem:[%s337 + $0x80] sm:$0xff] %v2682
        %2811 = vst [vmem:[%s337 + $0x88] sm:$0xff] %v2683
        %2812 = vst [vmem:[%s337 + $0x90] sm:$0xff] %v2684
        %2813 = vst [vmem:[%s337 + $0x98] sm:$0xff] %v2685
        %2814 = vst [vmem:[%s337 + $0xa0] sm:$0xff] %v2686
        %2815 = vst [vmem:[%s337 + $0xa8] sm:$0xff] %v2687
        %2816 = vst [vmem:[%s337 + $0xb0] sm:$0xff] %v2688
        %2817 = vst [vmem:[%s337 + $0xb8] sm:$0xff] %v2689
        %2818 = vst [vmem:[%s337 + $0xc0] sm:$0xff] %v2690
        %2819 = vst [vmem:[%s337 + $0xc8] sm:$0xff] %v2691
        %2820 = vst [vmem:[%s337 + $0xd0] sm:$0xff] %v2692
        %2821 = vst [vmem:[%s337 + $0xd8] sm:$0xff] %v2693
        %2822 = vst [vmem:[%s337 + $0xe0] sm:$0xff] %v2694
        %2823 = vst [vmem:[%s337 + $0xe8] sm:$0xff] %v2695
        %2824 = vst [vmem:[%s337 + $0xf0] sm:$0xff] %v2696
        %2825 = vst [vmem:[%s337 + $0xf8] sm:$0xff] %v2697
        %2826 = vst [vmem:[%s337 + $0x100] sm:$0xff] %v2698
        %2827 = vst [vmem:[%s337 + $0x108] sm:$0xff] %v2699
        %2828 = vst [vmem:[%s337 + $0x110] sm:$0xff] %v2700
        %2829 = vst [vmem:[%s337 + $0x118] sm:$0xff] %v2701
        %2830 = vst [vmem:[%s337 + $0x120] sm:$0xff] %v2702
        %2831 = vst [vmem:[%s337 + $0x128] sm:$0xff] %v2703
        %2832 = vst [vmem:[%s337 + $0x130] sm:$0xff] %v2704
        %2833 = vst [vmem:[%s337 + $0x138] sm:$0xff] %v2705
        %2834 = vst [vmem:[%s337 + $0x140] sm:$0xff] %v2706
        %2835 = vst [vmem:[%s337 + $0x148] sm:$0xff] %v2707
        %2836 = vst [vmem:[%s337 + $0x150] sm:$0xff] %v2708
        %2837 = vst [vmem:[%s337 + $0x158] sm:$0xff] %v2709
        %2838 = vst [vmem:[%s337 + $0x160] sm:$0xff] %v2710
        %2839 = vst [vmem:[%s337 + $0x168] sm:$0xff] %v2711
        %2840 = vst [vmem:[%s337 + $0x170] sm:$0xff] %v2712
        %2841 = vst [vmem:[%s337 + $0x178] sm:$0xff] %v2713
        %2842 = vst [vmem:[%s337 + $0x180] sm:$0xff] %v2714
        %2843 = vst [vmem:[%s337 + $0x188] sm:$0xff] %v2715
        %2844 = vst [vmem:[%s337 + $0x190] sm:$0xff] %v2716
        %2845 = vst [vmem:[%s337 + $0x198] sm:$0xff] %v2717
        %2846 = vst [vmem:[%s337 + $0x1a0] sm:$0xff] %v2718
        %2847 = vst [vmem:[%s337 + $0x1a8] sm:$0xff] %v2719
        %2848 = vst [vmem:[%s337 + $0x1b0] sm:$0xff] %v2720
        %2849 = vst [vmem:[%s337 + $0x1b8] sm:$0xff] %v2721
        %2850 = vst [vmem:[%s337 + $0x1c0] sm:$0xff] %v2722
        %2851 = vst [vmem:[%s337 + $0x1c8] sm:$0xff] %v2723
        %2852 = vst [vmem:[%s337 + $0x1d0] sm:$0xff] %v2724
        %2853 = vst [vmem:[%s337 + $0x1d8] sm:$0xff] %v2725
        %2854 = vst [vmem:[%s337 + $0x1e0] sm:$0xff] %v2726
        %2855 = vst [vmem:[%s337 + $0x1e8] sm:$0xff] %v2727
        %2856 = vst [vmem:[%s337 + $0x1f0] sm:$0xff] %v2728
        %2857 = vst [vmem:[%s337 + $0x1f8] sm:$0xff] %v2729
        %2858 = vst [vmem:[%s337 + $0x200] sm:$0xff] %v2730
        %2859 = vst [vmem:[%s337 + $0x208] sm:$0xff] %v2731
        %2860 = vst [vmem:[%s337 + $0x210] sm:$0xff] %v2732
        %2861 = vst [vmem:[%s337 + $0x218] sm:$0xff] %v2733
        %2862 = vst [vmem:[%s337 + $0x220] sm:$0xff] %v2734
        %2863 = vst [vmem:[%s337 + $0x228] sm:$0xff] %v2735
        %2864 = vst [vmem:[%s337 + $0x230] sm:$0xff] %v2736
        %2865 = vst [vmem:[%s337 + $0x238] sm:$0xff] %v2737
        %2866 = vst [vmem:[%s337 + $0x240] sm:$0xff] %v2738
        %2867 = vst [vmem:[%s337 + $0x248] sm:$0xff] %v2739
        %2868 = vst [vmem:[%s337 + $0x250] sm:$0xff] %v2740
        %2869 = vst [vmem:[%s337 + $0x258] sm:$0xff] %v2741
        %2870 = vst [vmem:[%s337 + $0x260] sm:$0xff] %v2742
        %2871 = vst [vmem:[%s337 + $0x268] sm:$0xff] %v2743
        %2872 = vst [vmem:[%s337 + $0x270] sm:$0xff] %v2744
        %2873 = vst [vmem:[%s337 + $0x278] sm:$0xff] %v2745
        %2874 = vst [vmem:[%s337 + $0x280] sm:$0xff] %v2746
        %2875 = vst [vmem:[%s337 + $0x288] sm:$0xff] %v2747
        %2876 = vst [vmem:[%s337 + $0x290] sm:$0xff] %v2748
        %2877 = vst [vmem:[%s337 + $0x298] sm:$0xff] %v2749
        %2878 = vst [vmem:[%s337 + $0x2a0] sm:$0xff] %v2750
        %2879 = vst [vmem:[%s337 + $0x2a8] sm:$0xff] %v2751
        %2880 = vst [vmem:[%s337 + $0x2b0] sm:$0xff] %v2752
        %2881 = vst [vmem:[%s337 + $0x2b8] sm:$0xff] %v2753
        %2882 = vst [vmem:[%s337 + $0x2c0] sm:$0xff] %v2754
        %2883 = vst [vmem:[%s337 + $0x2c8] sm:$0xff] %v2755
        %2884 = vst [vmem:[%s337 + $0x2d0] sm:$0xff] %v2756
        %2885 = vst [vmem:[%s337 + $0x2d8] sm:$0xff] %v2757
        %2886 = vst [vmem:[%s337 + $0x2e0] sm:$0xff] %v2758
        %2887 = vst [vmem:[%s337 + $0x2e8] sm:$0xff] %v2759
        %2888 = vst [vmem:[%s337 + $0x2f0] sm:$0xff] %v2760
        %2889 = vst [vmem:[%s337 + $0x2f8] sm:$0xff] %v2761
        %2890 = vst [vmem:[%s337 + $0x300] sm:$0xff] %v2762
        %2891 = vst [vmem:[%s337 + $0x308] sm:$0xff] %v2763
        %2892 = vst [vmem:[%s337 + $0x310] sm:$0xff] %v2764
        %2893 = vst [vmem:[%s337 + $0x318] sm:$0xff] %v2765
        %2894 = vst [vmem:[%s337 + $0x320] sm:$0xff] %v2766
        %2895 = vst [vmem:[%s337 + $0x328] sm:$0xff] %v2767
        %2896 = vst [vmem:[%s337 + $0x330] sm:$0xff] %v2768
        %2897 = vst [vmem:[%s337 + $0x338] sm:$0xff] %v2769
        %2898 = vst [vmem:[%s337 + $0x340] sm:$0xff] %v2770
        %2899 = vst [vmem:[%s337 + $0x348] sm:$0xff] %v2771
        %2900 = vst [vmem:[%s337 + $0x350] sm:$0xff] %v2772
        %2901 = vst [vmem:[%s337 + $0x358] sm:$0xff] %v2773
        %2902 = vst [vmem:[%s337 + $0x360] sm:$0xff] %v2774
        %2903 = vst [vmem:[%s337 + $0x368] sm:$0xff] %v2775
        %2904 = vst [vmem:[%s337 + $0x370] sm:$0xff] %v2776
        %2905 = vst [vmem:[%s337 + $0x378] sm:$0xff] %v2777
        %2906 = vst [vmem:[%s337 + $0x380] sm:$0xff] %v2778
        %2907 = vst [vmem:[%s337 + $0x388] sm:$0xff] %v2779
        %2908 = vst [vmem:[%s337 + $0x390] sm:$0xff] %v2780
        %2909 = vst [vmem:[%s337 + $0x398] sm:$0xff] %v2781
        %2910 = vst [vmem:[%s337 + $0x3a0] sm:$0xff] %v2782
        %2911 = vst [vmem:[%s337 + $0x3a8] sm:$0xff] %v2783
        %2912 = vst [vmem:[%s337 + $0x3b0] sm:$0xff] %v2784
        %2913 = vst [vmem:[%s337 + $0x3b8] sm:$0xff] %v2785
        %2914 = vst [vmem:[%s337 + $0x3c0] sm:$0xff] %v2786
        %2915 = vst [vmem:[%s337 + $0x3c8] sm:$0xff] %v2787
        %2916 = vst [vmem:[%s337 + $0x3d0] sm:$0xff] %v2788
        %2917 = vst [vmem:[%s337 + $0x3d8] sm:$0xff] %v2789
        %2918 = vst [vmem:[%s337 + $0x3e0] sm:$0xff] %v2790
        %2919 = vst [vmem:[%s337 + $0x3e8] sm:$0xff] %v2791
        %2920 = vst [vmem:[%s337 + $0x3f0] sm:$0xff] %v2792
        %2921 = vst [vmem:[%s337 + $0x3f8] sm:$0xff] %v2793
        %s2922 = sand.u32 %s168, 1
        %s2923 = scalar_lea.sflag [#allocation4], %s2922
        %s2924 = sand.u32 %s168, 1
        %s2925 = smul.addr %s2924, 1024
        %s2926 = scalar_lea.vmem [#allocation8], %s2925
        // Predicated region
        $region57: #{tpu_custom_call.1} parent=43 // pred_check
          %p2927 = pneg %p178
        $region58: #{tpu_custom_call.1} parent=43 // pred_check_branch
          %2929 = sbr.rel (%p2927) target = $region60
        $region59: #{tpu_custom_call.1} parent=43 // pred_region
          %s2930 = smul.u32 64, %s24
          %s2931 = ssub.s32 80, %s2930
          %p2932 = scmp.lt.s32.totalorder %s2931, 64
          %s2933 = scalar_select %p2932, %s2931, 64
          %s2934 = smul.u32 128, %s2933
          %s2935 = smul.u32 %s2934, 2
          %s2937 = ssub.s32 16384, %s2935
          %2938 = vsyncadd %s2923, %s2937
          %p2939 = scmp.ne.s32.totalorder 0, %s2935
          %s2940 = smul.addr %s2930, 2
          %s2941 = smul.addr %s2940, 128
          %s2942 = scalar_lea.hbm %s6, %s2941
          %s2943 = smul.u32 16, %s2933
          %s2944 = sshll.u32 %s2926, 4
          %s2945 = int_to_ptr.vmem [resolvable:$true] %s2944
          %s2946 = sshll.u32 %s2943, 4
          %2950 = dma.vmem_to_hbm [thread:$0]  (%p2939), %s2945, %s2946, %s2942, %s2923, 256, 256, 16
        $region60: #{tpu_custom_call.1} parent=43 // pred_fallthru
          _
      $region44: #{tpu_custom_call.1} parent=5 // pred_fallthru
        _
      %p2951 = scmp.le.s32.totalorder 2, %s19
      // Predicated region
      $region61: #{tpu_custom_call.1} parent=5 // pred_check
        %p2952 = pneg %p2951
      $region62: #{tpu_custom_call.1} parent=5 // pred_check_branch
        %2954 = sbr.rel (%p2952) target = $region64
      $region63: #{tpu_custom_call.1} parent=5 // pred_region
        %s2955 = ssub.s32 %s19, 2
        // Predicated region
        $region65: #{tpu_custom_call.1} parent=63 // pred_check
          %p2956 = pneg %p184
        $region66: #{tpu_custom_call.1} parent=63 // pred_check_branch
          %2958 = sbr.rel (%p2956) target = $region68
        $region67: #{tpu_custom_call.1} parent=63 // pred_region
          %s2959 = sand.u32 %s169, 1
          %s2960 = scalar_lea.sflag [#allocation4], %s2959
          %s2961 = sand.u32 %s169, 1
          %s2962 = smul.addr %s2961, 1024
          %s2963 = scalar_lea.vmem [#allocation8], %s2962
          %2964 = dma.done %s2960, 16384
        $region68: #{tpu_custom_call.1} parent=63 // pred_fallthru
          _
      $region64: #{tpu_custom_call.1} parent=5 // pred_fallthru
        _
    $region6: #{tpu_custom_call.1} parent=1 // loop_footer
      %s23 = sadd.s32 1, %s19
    $region7: #{tpu_custom_call.1} parent=1 // loop_footer_branch
      %18 = sbr.rel target = $region3
    $region8: #{tpu_custom_call.1} parent=1 // loop_exit
      _
    %2965 = vsyncpa [#allocation3], 1
    %s2966 = scalar_lea.sflag [#allocation3], 1
    %2967 = vsyncpa %s2966, 1
    %2968 = vsyncpa [#allocation6], 1
    %2969 = vsyncpa [#allocation4], 1
    %s2970 = scalar_lea.sflag [#allocation4], 1
    %2971 = vsyncpa %s2970, 1

</llo_original>
